<compile_context>
chip_gen: v5e
topology: v5e:2x2
jax: 0.10.0
libtpu: 0.0.40
codegen_flags: <defaults>
</compile_context>

<pallas_src>
import functools

import jax
import jax.numpy as jnp
import numpy as np
from jax.experimental import pallas as pl
from jax.experimental.pallas import tpu as pltpu

SEQ_LEN = 12          # hard-coded in the PyTorch forward (x.size(0) // 12)
LN_EPS = 1e-5         # nn.LayerNorm default
BB_MAX = 16           # batch elements per grid step (rows = BB*12); O(BB^2)
                      # score waste keeps the sweet spot around 8-16.


def _pick_block_batch(batch):
    """Pick BB so that rows = BB*12 is sublane-aligned and grid has >=2 steps."""
    if batch <= 2:
        return batch
    bb = min(BB_MAX, max(2, batch // 2))
    if bb % 2 and bb != batch:      # keep BB*12 a multiple of 8 sublanes
        bb += 1
    return min(bb, batch)


def _mha_kernel(x_ref, bias_ref, wqkv_ref, bqkv_ref, wo_ref, small_ref, o_ref,
                *, num_heads, head_dim):
    """One block of BB batch elements per grid step.

    x_ref:     (rows, F)          rows = BB * 12
    bias_ref:  (rows, rows)       additive mask: 0 allowed / -1e30 masked,
                                  block-diagonal over the BB batch elements.
    wqkv_ref:  (F, 3F)  bqkv_ref: (1, 3F)   (scale folded into Q columns)
    wo_ref:    (F, F)   small_ref: (3, F) = [bo; ln_gamma; ln_beta]
    o_ref:     (rows, F)
    """
    feat = num_heads * head_dim

    x = x_ref[...]                      # (rows, F)
    bias = bias_ref[...]                # (rows, rows)

    # Fused Q|K|V projection: one wide MXU matmul.
    qkv = jnp.dot(x, wqkv_ref[...],
                  preferred_element_type=jnp.float32) + bqkv_ref[...]

    proj = jnp.zeros(x.shape, jnp.float32)
    for h in range(num_heads):          # static, fully unrolled (4 iters)
        lo = h * head_dim
        qh = qkv[:, lo:lo + head_dim]                        # (rows, D), pre-scaled
        kh = qkv[:, feat + lo:feat + lo + head_dim]          # (rows, D)
        vh = qkv[:, 2 * feat + lo:2 * feat + lo + head_dim]  # (rows, D)

        # Block-diagonal masked scores over all rows of the block.  Cross-batch
        # and non-edge pairs get -1e30 -> exactly 0 after softmax.
        s = jax.lax.dot_general(qh, kh, (((1,), (1,)), ((), ())),
                                preferred_element_type=jnp.float32)
        s = s + bias

        m = jnp.max(s, axis=-1, keepdims=True)
        e = jnp.exp(s - m)
        denom = jnp.sum(e, axis=-1, keepdims=True)
        p = e * pl.reciprocal(denom, approx=True)
        # dropout: eval mode -> identity
        # TODO(synk): training-mode dropout would need pltpu.prng_seed/prng_random_bits.

        oh = jnp.dot(p, vh, preferred_element_type=jnp.float32)     # (rows, D)
        # Fold head output straight into the output projection
        # (== concat(heads) @ Wo) without a lane-axis concatenate.
        proj = proj + jnp.dot(oh, wo_ref[lo:lo + head_dim, :],
                              preferred_element_type=jnp.float32)

    bo = small_ref[0:1, :]
    gamma = small_ref[1:2, :]
    beta = small_ref[2:3, :]

    # Residual + LayerNorm.
    y = proj + bo + x
    mean = jnp.mean(y, axis=-1, keepdims=True)
    var = jnp.mean((y - mean) ** 2, axis=-1, keepdims=True)
    y = (y - mean) * jax.lax.rsqrt(var + LN_EPS)
    o_ref[...] = y * gamma + beta


def multi_head_attention_pallas(x_flat, edge_index, params, num_heads=4):
    """x_flat: (B*12, F) float32; edge_index: (E, 2) int32 of (src, dst) pairs."""
    n, feat = x_flat.shape
    batch = n // SEQ_LEN
    head_dim = feat // num_heads
    scale = float(head_dim) ** -0.5

    bb = _pick_block_batch(batch)
    rows = bb * SEQ_LEN
    grid = (pl.cdiv(batch, bb),)

    # Edge mask is identical for every batch element (as in the PyTorch code),
    # so build ONE additive bias, block-diagonal over the BB elements of a block.
    # Note: a node with zero incident edges would NaN in PyTorch; here it would
    # fall back to an (incorrect) uniform row — same caveat as the reference.
    edge01 = jnp.zeros((SEQ_LEN, SEQ_LEN), jnp.float32)
    edge01 = edge01.at[edge_index[:, 0], edge_index[:, 1]].set(1.0)
    blk = jnp.kron(jnp.eye(bb, dtype=jnp.float32), edge01)          # (rows, rows)
    bias = jnp.where(blk > 0.5, 0.0, -1e30).astype(jnp.float32)

    # PyTorch Linear weights are (out, in); pre-transpose to (in, out).
    # Fold the 1/sqrt(head_dim) score scale into the Q projection (free).
    wqkv = jnp.concatenate(
        [params["wq"].T * scale, params["wk"].T, params["wv"].T], axis=1)   # (F, 3F)
    bqkv = jnp.concatenate(
        [params["bq"] * scale, params["bk"], params["bv"]]).reshape(1, 3 * feat)
    wo = params["wo"].T                                                     # (F, F)
    small = jnp.stack(
        [params["bo"], params["ln_gamma"], params["ln_beta"]])              # (3, F)

    kernel = functools.partial(_mha_kernel, num_heads=num_heads,
                               head_dim=head_dim)

    out = pl.pallas_call(
        kernel,
        out_shape=jax.ShapeDtypeStruct((batch * SEQ_LEN, feat), jnp.float32),
        grid=grid,
        in_specs=[pl.BlockSpec((rows, feat), lambda b: (b, 0)),
                  pl.BlockSpec((rows, rows), lambda b: (0, 0)),
                  pl.BlockSpec((feat, 3 * feat), lambda b: (0, 0)),
                  pl.BlockSpec((1, 3 * feat), lambda b: (0, 0)),
                  pl.BlockSpec((feat, feat), lambda b: (0, 0)),
                  pl.BlockSpec((3, feat), lambda b: (0, 0))],
        out_specs=pl.BlockSpec((rows, feat), lambda b: (b, 0)),
        compiler_params=pltpu.CompilerParams(
            dimension_semantics=("parallel",)),
    )(x_flat, bias, wqkv, bqkv, wo, small)

    return out


def multi_head_attention_ref(x_flat, edge_index, params, num_heads=4):
    """Plain-JAX reference mirroring the PyTorch forward (eval mode)."""
    n, feat = x_flat.shape
    batch = n // SEQ_LEN
    head_dim = feat // num_heads
    scale = float(head_dim) ** -0.5
    x = x_flat.reshape(batch, SEQ_LEN, feat)

    def lin(xx, w, b):
        return xx @ w.T + b

    q = lin(x, params["wq"], params["bq"])
    k = lin(x, params["wk"], params["bk"])
    v = lin(x, params["wv"], params["bv"])

    def split(t):
        return t.reshape(batch, SEQ_LEN, num_heads, head_dim).transpose(0, 2, 1, 3)

    q, k, v = split(q), split(k), split(v)
    scores = jnp.einsum("bhqd,bhkd->bhqk", q, k) * scale
    mask = jnp.zeros((batch, SEQ_LEN, SEQ_LEN), jnp.float32)
    mask = mask.at[:, edge_index[:, 0], edge_index[:, 1]].set(1.0)
    scores = jnp.where(mask[:, None, :, :] == 0.0, -jnp.inf, scores)
    attn = jax.nn.softmax(scores, axis=-1)
    out = jnp.einsum("bhqk,bhkd->bhqd", attn, v)
    out = out.transpose(0, 2, 1, 3).reshape(batch, SEQ_LEN, feat)
    out = lin(out, params["wo"], params["bo"])
    y = out + x
    mean = jnp.mean(y, axis=-1, keepdims=True)
    var = jnp.mean((y - mean) ** 2, axis=-1, keepdims=True)
    y = (y - mean) / jnp.sqrt(var + LN_EPS)
    y = y * params["ln_gamma"] + params["ln_beta"]
    return y.reshape(batch * SEQ_LEN, feat)


def init_params(key, feat):
    ks = jax.random.split(key, 8)
    s = 1.0 / np.sqrt(feat)
    return {
        "wq": jax.random.uniform(ks[0], (feat, feat), jnp.float32, -s, s),
        "bq": jax.random.uniform(ks[1], (feat,), jnp.float32, -s, s),
        "wk": jax.random.uniform(ks[2], (feat, feat), jnp.float32, -s, s),
        "bk": jax.random.uniform(ks[3], (feat,), jnp.float32, -s, s),
        "wv": jax.random.uniform(ks[4], (feat, feat), jnp.float32, -s, s),
        "bv": jax.random.uniform(ks[5], (feat,), jnp.float32, -s, s),
        "wo": jax.random.uniform(ks[6], (feat, feat), jnp.float32, -s, s),
        "bo": jax.random.uniform(ks[7], (feat,), jnp.float32, -s, s),
        "ln_gamma": jnp.ones((feat,), jnp.float32),
        "ln_beta": jnp.zeros((feat,), jnp.float32),
    }


if __name__ == "__main__":
    key = jax.random.PRNGKey(0)
    k_x, k_p = jax.random.split(key)

    batch, feat, num_heads = 8, 32, 4          # -> BB=4, grid=(2,)
    x_flat = jax.random.normal(k_x, (batch * SEQ_LEN, feat), jnp.float32)

    # Edge pairs applied to every batch element (self loops + ring) so every
    # attention row has at least one unmasked entry.
    edges = [(i, i) for i in range(SEQ_LEN)] + \
            [(i, (i + 1) % SEQ_LEN) for i in range(SEQ_LEN)]
    edge_index = jnp.array(edges, dtype=jnp.int32)   # (24, 2)

    params = init_params(k_p, feat)

    out = multi_head_attention_pallas(x_flat, edge_index, params, num_heads)
    out = jax.block_until_ready(out)

    ref = multi_head_attention_ref(x_flat, edge_index, params, num_heads)
    np.testing.assert_allclose(np.asarray(out), np.asarray(ref),
                               rtol=2e-2, atol=2e-2)

    print("KERNEL_OK")
</pallas_src>

<mosaic_0001>
module attributes {stable_mosaic.version = 11 : i64} {
  func.func @_mha_kernel(%arg0: i32, %arg1: memref<48x32xf32, #tpu.memory_space<vmem>>, %arg2: memref<48x48xf32, #tpu.memory_space<vmem>>, %arg3: memref<32x96xf32, #tpu.memory_space<vmem>>, %arg4: memref<1x96xf32, #tpu.memory_space<vmem>>, %arg5: memref<32x32xf32, #tpu.memory_space<vmem>>, %arg6: memref<3x32xf32, #tpu.memory_space<vmem>>, %arg7: memref<48x32xf32, #tpu.memory_space<vmem>>) attributes {dimension_semantics = [#tpu.dimension_semantics<parallel>], iteration_bounds = array<i64: 2>, scalar_prefetch = 0 : i64, scratch_operands = 0 : i64, tpu.core_type = #tpu.core_type<tc>, window_params = [{transform_indices = @transform_0, window_bounds = array<i64: 48, 32>}, {pipeline_mode = #tpu.pipeline_mode<synchronous>, transform_indices = @transform_1, window_bounds = array<i64: 48, 48>}, {pipeline_mode = #tpu.pipeline_mode<synchronous>, transform_indices = @transform_2, window_bounds = array<i64: 32, 96>}, {pipeline_mode = #tpu.pipeline_mode<synchronous>, transform_indices = @transform_3, window_bounds = array<i64: 1, 96>}, {pipeline_mode = #tpu.pipeline_mode<synchronous>, transform_indices = @transform_4, window_bounds = array<i64: 32, 32>}, {pipeline_mode = #tpu.pipeline_mode<synchronous>, transform_indices = @transform_5, window_bounds = array<i64: 3, 32>}, {transform_indices = @transform_6, window_bounds = array<i64: 48, 32>}]} {
    %c0 = arith.constant 0 : index
    %c0_0 = arith.constant 0 : index
    %0 = vector.load %arg1[%c0, %c0_0] : memref<48x32xf32, #tpu.memory_space<vmem>>, vector<48x32xf32>
    %c0_1 = arith.constant 0 : index
    %c0_2 = arith.constant 0 : index
    %1 = vector.load %arg2[%c0_1, %c0_2] : memref<48x48xf32, #tpu.memory_space<vmem>>, vector<48x48xf32>
    %c0_3 = arith.constant 0 : index
    %c0_4 = arith.constant 0 : index
    %2 = vector.load %arg3[%c0_3, %c0_4] : memref<32x96xf32, #tpu.memory_space<vmem>>, vector<32x96xf32>
    %cst = arith.constant dense<0.000000e+00> : vector<48x96xf32>
    %3 = tpu.matmul %0, %2, %cst {dimension_numbers = #tpu.dot_dimension_numbers<[1], [0], [0], [1], [0, 0, 1, 1], [], []>} : vector<48x32xf32>, vector<32x96xf32>, vector<48x96xf32> -> vector<48x96xf32>
    %c0_5 = arith.constant 0 : index
    %c0_6 = arith.constant 0 : index
    %4 = vector.load %arg4[%c0_5, %c0_6] : memref<1x96xf32, #tpu.memory_space<vmem>>, vector<1x96xf32>
    %5 = vector.broadcast %4 : vector<1x96xf32> to vector<48x96xf32>
    %6 = arith.addf %3, %5 : vector<48x96xf32>
    %cst_7 = arith.constant 0.000000e+00 : f32
    %7 = vector.broadcast %cst_7 : f32 to vector<48x32xf32>
    %8 = vector.extract_strided_slice %6 {offsets = [0, 0], sizes = [48, 8], strides = [1, 1]} : vector<48x96xf32> to vector<48x8xf32>
    %9 = vector.extract_strided_slice %6 {offsets = [0, 32], sizes = [48, 8], strides = [1, 1]} : vector<48x96xf32> to vector<48x8xf32>
    %10 = vector.extract_strided_slice %6 {offsets = [0, 64], sizes = [48, 8], strides = [1, 1]} : vector<48x96xf32> to vector<48x8xf32>
    %cst_8 = arith.constant dense<0.000000e+00> : vector<48x48xf32>
    %11 = tpu.matmul %8, %9, %cst_8 {dimension_numbers = #tpu.dot_dimension_numbers<[1], [1], [0], [0], [0, 0, 1, 0], [], []>} : vector<48x8xf32>, vector<48x8xf32>, vector<48x48xf32> -> vector<48x48xf32>
    %12 = arith.addf %11, %1 : vector<48x48xf32>
    %cst_9 = arith.constant dense<0xFF800000> : vector<48xf32>
    %13 = vector.multi_reduction <maximumf>, %12, %cst_9 [1] : vector<48x48xf32> to vector<48xf32>
    %14 = vector.shape_cast %13 : vector<48xf32> to vector<48x1xf32>
    %15 = vector.broadcast %14 : vector<48x1xf32> to vector<48x48xf32>
    %16 = arith.subf %12, %15 : vector<48x48xf32>
    %17 = math.exp %16 : vector<48x48xf32>
    %cst_10 = arith.constant dense<0.000000e+00> : vector<48xf32>
    %18 = vector.multi_reduction <add>, %17, %cst_10 [1] : vector<48x48xf32> to vector<48xf32>
    %19 = vector.shape_cast %18 : vector<48xf32> to vector<48x1xf32>
    %20 = tpu.reciprocal %19 {approx = true} : vector<48x1xf32> -> vector<48x1xf32>
    %21 = vector.broadcast %20 : vector<48x1xf32> to vector<48x48xf32>
    %22 = arith.mulf %17, %21 : vector<48x48xf32>
    %cst_11 = arith.constant dense<0.000000e+00> : vector<48x8xf32>
    %23 = tpu.matmul %22, %10, %cst_11 {dimension_numbers = #tpu.dot_dimension_numbers<[1], [0], [0], [1], [0, 0, 1, 1], [], []>} : vector<48x48xf32>, vector<48x8xf32>, vector<48x8xf32> -> vector<48x8xf32>
    %c0_12 = arith.constant 0 : index
    %c0_13 = arith.constant 0 : index
    %24 = vector.load %arg5[%c0_12, %c0_13] : memref<32x32xf32, #tpu.memory_space<vmem>>, vector<8x32xf32>
    %cst_14 = arith.constant dense<0.000000e+00> : vector<48x32xf32>
    %25 = tpu.matmul %23, %24, %cst_14 {dimension_numbers = #tpu.dot_dimension_numbers<[1], [0], [0], [1], [0, 0, 1, 1], [], []>} : vector<48x8xf32>, vector<8x32xf32>, vector<48x32xf32> -> vector<48x32xf32>
    %26 = arith.addf %7, %25 : vector<48x32xf32>
    %27 = vector.extract_strided_slice %6 {offsets = [0, 8], sizes = [48, 8], strides = [1, 1]} : vector<48x96xf32> to vector<48x8xf32>
    %28 = vector.extract_strided_slice %6 {offsets = [0, 40], sizes = [48, 8], strides = [1, 1]} : vector<48x96xf32> to vector<48x8xf32>
    %29 = vector.extract_strided_slice %6 {offsets = [0, 72], sizes = [48, 8], strides = [1, 1]} : vector<48x96xf32> to vector<48x8xf32>
    %cst_15 = arith.constant dense<0.000000e+00> : vector<48x48xf32>
    %30 = tpu.matmul %27, %28, %cst_15 {dimension_numbers = #tpu.dot_dimension_numbers<[1], [1], [0], [0], [0, 0, 1, 0], [], []>} : vector<48x8xf32>, vector<48x8xf32>, vector<48x48xf32> -> vector<48x48xf32>
    %31 = arith.addf %30, %1 : vector<48x48xf32>
    %cst_16 = arith.constant dense<0xFF800000> : vector<48xf32>
    %32 = vector.multi_reduction <maximumf>, %31, %cst_16 [1] : vector<48x48xf32> to vector<48xf32>
    %33 = vector.shape_cast %32 : vector<48xf32> to vector<48x1xf32>
    %34 = vector.broadcast %33 : vector<48x1xf32> to vector<48x48xf32>
    %35 = arith.subf %31, %34 : vector<48x48xf32>
    %36 = math.exp %35 : vector<48x48xf32>
    %cst_17 = arith.constant dense<0.000000e+00> : vector<48xf32>
    %37 = vector.multi_reduction <add>, %36, %cst_17 [1] : vector<48x48xf32> to vector<48xf32>
    %38 = vector.shape_cast %37 : vector<48xf32> to vector<48x1xf32>
    %39 = tpu.reciprocal %38 {approx = true} : vector<48x1xf32> -> vector<48x1xf32>
    %40 = vector.broadcast %39 : vector<48x1xf32> to vector<48x48xf32>
    %41 = arith.mulf %36, %40 : vector<48x48xf32>
    %cst_18 = arith.constant dense<0.000000e+00> : vector<48x8xf32>
    %42 = tpu.matmul %41, %29, %cst_18 {dimension_numbers = #tpu.dot_dimension_numbers<[1], [0], [0], [1], [0, 0, 1, 1], [], []>} : vector<48x48xf32>, vector<48x8xf32>, vector<48x8xf32> -> vector<48x8xf32>
    %c8 = arith.constant 8 : index
    %c0_19 = arith.constant 0 : index
    %43 = vector.load %arg5[%c8, %c0_19] : memref<32x32xf32, #tpu.memory_space<vmem>>, vector<8x32xf32>
    %cst_20 = arith.constant dense<0.000000e+00> : vector<48x32xf32>
    %44 = tpu.matmul %42, %43, %cst_20 {dimension_numbers = #tpu.dot_dimension_numbers<[1], [0], [0], [1], [0, 0, 1, 1], [], []>} : vector<48x8xf32>, vector<8x32xf32>, vector<48x32xf32> -> vector<48x32xf32>
    %45 = arith.addf %26, %44 : vector<48x32xf32>
    %46 = vector.extract_strided_slice %6 {offsets = [0, 16], sizes = [48, 8], strides = [1, 1]} : vector<48x96xf32> to vector<48x8xf32>
    %47 = vector.extract_strided_slice %6 {offsets = [0, 48], sizes = [48, 8], strides = [1, 1]} : vector<48x96xf32> to vector<48x8xf32>
    %48 = vector.extract_strided_slice %6 {offsets = [0, 80], sizes = [48, 8], strides = [1, 1]} : vector<48x96xf32> to vector<48x8xf32>
    %cst_21 = arith.constant dense<0.000000e+00> : vector<48x48xf32>
    %49 = tpu.matmul %46, %47, %cst_21 {dimension_numbers = #tpu.dot_dimension_numbers<[1], [1], [0], [0], [0, 0, 1, 0], [], []>} : vector<48x8xf32>, vector<48x8xf32>, vector<48x48xf32> -> vector<48x48xf32>
    %50 = arith.addf %49, %1 : vector<48x48xf32>
    %cst_22 = arith.constant dense<0xFF800000> : vector<48xf32>
    %51 = vector.multi_reduction <maximumf>, %50, %cst_22 [1] : vector<48x48xf32> to vector<48xf32>
    %52 = vector.shape_cast %51 : vector<48xf32> to vector<48x1xf32>
    %53 = vector.broadcast %52 : vector<48x1xf32> to vector<48x48xf32>
    %54 = arith.subf %50, %53 : vector<48x48xf32>
    %55 = math.exp %54 : vector<48x48xf32>
    %cst_23 = arith.constant dense<0.000000e+00> : vector<48xf32>
    %56 = vector.multi_reduction <add>, %55, %cst_23 [1] : vector<48x48xf32> to vector<48xf32>
    %57 = vector.shape_cast %56 : vector<48xf32> to vector<48x1xf32>
    %58 = tpu.reciprocal %57 {approx = true} : vector<48x1xf32> -> vector<48x1xf32>
    %59 = vector.broadcast %58 : vector<48x1xf32> to vector<48x48xf32>
    %60 = arith.mulf %55, %59 : vector<48x48xf32>
    %cst_24 = arith.constant dense<0.000000e+00> : vector<48x8xf32>
    %61 = tpu.matmul %60, %48, %cst_24 {dimension_numbers = #tpu.dot_dimension_numbers<[1], [0], [0], [1], [0, 0, 1, 1], [], []>} : vector<48x48xf32>, vector<48x8xf32>, vector<48x8xf32> -> vector<48x8xf32>
    %c16 = arith.constant 16 : index
    %c0_25 = arith.constant 0 : index
    %62 = vector.load %arg5[%c16, %c0_25] : memref<32x32xf32, #tpu.memory_space<vmem>>, vector<8x32xf32>
    %cst_26 = arith.constant dense<0.000000e+00> : vector<48x32xf32>
    %63 = tpu.matmul %61, %62, %cst_26 {dimension_numbers = #tpu.dot_dimension_numbers<[1], [0], [0], [1], [0, 0, 1, 1], [], []>} : vector<48x8xf32>, vector<8x32xf32>, vector<48x32xf32> -> vector<48x32xf32>
    %64 = arith.addf %45, %63 : vector<48x32xf32>
    %65 = vector.extract_strided_slice %6 {offsets = [0, 24], sizes = [48, 8], strides = [1, 1]} : vector<48x96xf32> to vector<48x8xf32>
    %66 = vector.extract_strided_slice %6 {offsets = [0, 56], sizes = [48, 8], strides = [1, 1]} : vector<48x96xf32> to vector<48x8xf32>
    %67 = vector.extract_strided_slice %6 {offsets = [0, 88], sizes = [48, 8], strides = [1, 1]} : vector<48x96xf32> to vector<48x8xf32>
    %cst_27 = arith.constant dense<0.000000e+00> : vector<48x48xf32>
    %68 = tpu.matmul %65, %66, %cst_27 {dimension_numbers = #tpu.dot_dimension_numbers<[1], [1], [0], [0], [0, 0, 1, 0], [], []>} : vector<48x8xf32>, vector<48x8xf32>, vector<48x48xf32> -> vector<48x48xf32>
    %69 = arith.addf %68, %1 : vector<48x48xf32>
    %cst_28 = arith.constant dense<0xFF800000> : vector<48xf32>
    %70 = vector.multi_reduction <maximumf>, %69, %cst_28 [1] : vector<48x48xf32> to vector<48xf32>
    %71 = vector.shape_cast %70 : vector<48xf32> to vector<48x1xf32>
    %72 = vector.broadcast %71 : vector<48x1xf32> to vector<48x48xf32>
    %73 = arith.subf %69, %72 : vector<48x48xf32>
    %74 = math.exp %73 : vector<48x48xf32>
    %cst_29 = arith.constant dense<0.000000e+00> : vector<48xf32>
    %75 = vector.multi_reduction <add>, %74, %cst_29 [1] : vector<48x48xf32> to vector<48xf32>
    %76 = vector.shape_cast %75 : vector<48xf32> to vector<48x1xf32>
    %77 = tpu.reciprocal %76 {approx = true} : vector<48x1xf32> -> vector<48x1xf32>
    %78 = vector.broadcast %77 : vector<48x1xf32> to vector<48x48xf32>
    %79 = arith.mulf %74, %78 : vector<48x48xf32>
    %cst_30 = arith.constant dense<0.000000e+00> : vector<48x8xf32>
    %80 = tpu.matmul %79, %67, %cst_30 {dimension_numbers = #tpu.dot_dimension_numbers<[1], [0], [0], [1], [0, 0, 1, 1], [], []>} : vector<48x48xf32>, vector<48x8xf32>, vector<48x8xf32> -> vector<48x8xf32>
    %c24 = arith.constant 24 : index
    %c0_31 = arith.constant 0 : index
    %81 = vector.load %arg5[%c24, %c0_31] : memref<32x32xf32, #tpu.memory_space<vmem>>, vector<8x32xf32>
    %cst_32 = arith.constant dense<0.000000e+00> : vector<48x32xf32>
    %82 = tpu.matmul %80, %81, %cst_32 {dimension_numbers = #tpu.dot_dimension_numbers<[1], [0], [0], [1], [0, 0, 1, 1], [], []>} : vector<48x8xf32>, vector<8x32xf32>, vector<48x32xf32> -> vector<48x32xf32>
    %83 = arith.addf %64, %82 : vector<48x32xf32>
    %c0_33 = arith.constant 0 : index
    %c0_34 = arith.constant 0 : index
    %84 = vector.load %arg6[%c0_33, %c0_34] : memref<3x32xf32, #tpu.memory_space<vmem>>, vector<1x32xf32>
    %c1 = arith.constant 1 : index
    %c0_35 = arith.constant 0 : index
    %85 = vector.load %arg6[%c1, %c0_35] : memref<3x32xf32, #tpu.memory_space<vmem>>, vector<1x32xf32>
    %c2 = arith.constant 2 : index
    %c0_36 = arith.constant 0 : index
    %86 = vector.load %arg6[%c2, %c0_36] : memref<3x32xf32, #tpu.memory_space<vmem>>, vector<1x32xf32>
    %87 = vector.broadcast %84 : vector<1x32xf32> to vector<48x32xf32>
    %88 = arith.addf %83, %87 : vector<48x32xf32>
    %89 = arith.addf %88, %0 : vector<48x32xf32>
    %cst_37 = arith.constant dense<0.000000e+00> : vector<48xf32>
    %90 = vector.multi_reduction <add>, %89, %cst_37 [1] : vector<48x32xf32> to vector<48xf32>
    %91 = vector.shape_cast %90 : vector<48xf32> to vector<48x1xf32>
    %cst_38 = arith.constant 3.200000e+01 : f32
    %92 = vector.broadcast %cst_38 : f32 to vector<48x1xf32>
    %93 = arith.divf %91, %92 : vector<48x1xf32>
    %94 = vector.broadcast %93 : vector<48x1xf32> to vector<48x32xf32>
    %95 = arith.subf %89, %94 : vector<48x32xf32>
    %96 = arith.mulf %95, %95 : vector<48x32xf32>
    %cst_39 = arith.constant dense<0.000000e+00> : vector<48xf32>
    %97 = vector.multi_reduction <add>, %96, %cst_39 [1] : vector<48x32xf32> to vector<48xf32>
    %98 = vector.shape_cast %97 : vector<48xf32> to vector<48x1xf32>
    %cst_40 = arith.constant 3.200000e+01 : f32
    %99 = vector.broadcast %cst_40 : f32 to vector<48x1xf32>
    %100 = arith.divf %98, %99 : vector<48x1xf32>
    %101 = vector.broadcast %93 : vector<48x1xf32> to vector<48x32xf32>
    %102 = arith.subf %89, %101 : vector<48x32xf32>
    %cst_41 = arith.constant 9.99999974E-6 : f32
    %103 = vector.broadcast %cst_41 : f32 to vector<48x1xf32>
    %104 = arith.addf %100, %103 : vector<48x1xf32>
    %105 = math.rsqrt %104 : vector<48x1xf32>
    %106 = vector.broadcast %105 : vector<48x1xf32> to vector<48x32xf32>
    %107 = arith.mulf %102, %106 : vector<48x32xf32>
    %108 = vector.broadcast %85 : vector<1x32xf32> to vector<48x32xf32>
    %109 = arith.mulf %107, %108 : vector<48x32xf32>
    %110 = vector.broadcast %86 : vector<1x32xf32> to vector<48x32xf32>
    %111 = arith.addf %109, %110 : vector<48x32xf32>
    %c0_42 = arith.constant 0 : index
    %c0_43 = arith.constant 0 : index
    %112 = vector.load %arg7[%c0_42, %c0_43] : memref<48x32xf32, #tpu.memory_space<vmem>>, vector<48x32xf32>
    tpu.vector_store %arg7[%c0_42, %c0_43], %111 {strides = array<i32>} : memref<48x32xf32, #tpu.memory_space<vmem>>, vector<48x32xf32>,
    return
  }
  func.func @transform_0(%arg0: i32) -> (i32, i32) {
    %c0_i32 = arith.constant 0 : i32
    %c0_i32_0 = arith.constant 0 : i32
    return %arg0, %c0_i32 : i32, i32
  }
  func.func @transform_1(%arg0: i32) -> (i32, i32) {
    %c0_i32 = arith.constant 0 : i32
    %c0_i32_0 = arith.constant 0 : i32
    %c0_i32_1 = arith.constant 0 : i32
    return %c0_i32, %c0_i32_0 : i32, i32
  }
  func.func @transform_2(%arg0: i32) -> (i32, i32) {
    %c0_i32 = arith.constant 0 : i32
    %c0_i32_0 = arith.constant 0 : i32
    %c0_i32_1 = arith.constant 0 : i32
    return %c0_i32, %c0_i32_0 : i32, i32
  }
  func.func @transform_3(%arg0: i32) -> (i32, i32) {
    %c0_i32 = arith.constant 0 : i32
    %c0_i32_0 = arith.constant 0 : i32
    %c0_i32_1 = arith.constant 0 : i32
    return %c0_i32, %c0_i32_0 : i32, i32
  }
  func.func @transform_4(%arg0: i32) -> (i32, i32) {
    %c0_i32 = arith.constant 0 : i32
    %c0_i32_0 = arith.constant 0 : i32
    %c0_i32_1 = arith.constant 0 : i32
    return %c0_i32, %c0_i32_0 : i32, i32
  }
  func.func @transform_5(%arg0: i32) -> (i32, i32) {
    %c0_i32 = arith.constant 0 : i32
    %c0_i32_0 = arith.constant 0 : i32
    %c0_i32_1 = arith.constant 0 : i32
    return %c0_i32, %c0_i32_0 : i32, i32
  }
  func.func @transform_6(%arg0: i32) -> (i32, i32) {
    %c0_i32 = arith.constant 0 : i32
    %c0_i32_0 = arith.constant 0 : i32
    return %arg0, %c0_i32 : i32, i32
  }
}

</mosaic_0001>

<llo_original>
// kernel: tpu_custom_call.1
$region0: #{tpu_custom_call.1}
  #allocation0 [shape = 'u32[]', space=smem, size = 0x4, offset = 0x4, fixed_abs, tag = 'smem constant byte address 0x4 - core index']
  #allocation1 [shape = 'u32[72,128]{1,0:T(1,128)}', space=vmem, size = 0x9000, scoped, tag = 'internal scratch']
  %s0 = inlined_call_operand.vmem [shape: f32[96,32], index: 0, kind: input, shape index: {}]
  %s1 = inlined_call_operand.vmem [shape: f32[48,48], index: 1, kind: input, shape index: {}]
  %s2 = inlined_call_operand.vmem [shape: f32[32,96], index: 2, kind: input, shape index: {}]
  %s3 = inlined_call_operand.vmem [shape: f32[1,96], index: 3, kind: input, shape index: {}]
  %s4 = inlined_call_operand.vmem [shape: f32[32,32], index: 4, kind: input, shape index: {}]
  %s5 = inlined_call_operand.vmem [shape: f32[3,32], index: 5, kind: input, shape index: {}]
  %s6 = inlined_call_operand.vmem [shape: f32[96,32], index: 6, kind: output, shape index: {}]
  %s7 = sld [smem:[#allocation0]]
  $region57: #{tpu_custom_call.1} parent=0
    _
  %s9 = ssub.s32 1, %s7
  %s10 = scalar_select 0, %s9, %s7
  loop: start=0, step=1, limit=4
  $region2: #{tpu_custom_call.1} parent=0 // loop_pre_header
    _
  $region3: #{tpu_custom_call.1} parent=0 // loop_header
    %s12 = sphi 0, %s16
    %p13 = scmp.ge.s32.totalorder %s12, 4
    %s22 = sphi 0, %s24
    %s25 = sphi 0, %s22
    %s26 = sphi 0, %s25
    %s42 = sphi 0, %s26
    %s46 = sphi 0, %s46
    %s48 = sphi 0, %s46
    %s49 = sphi 0, %s48
    %s63 = sphi 0, %s49
    %s67 = sphi 0, %s67
    %s69 = sphi 0, %s67
    %s70 = sphi 0, %s69
    %s84 = sphi 0, %s70
    %s88 = sphi 0, %s88
    %s90 = sphi 0, %s88
    %s91 = sphi 0, %s90
    %s105 = sphi 0, %s91
    %s109 = sphi 0, %s109
    %s111 = sphi 0, %s109
    %s112 = sphi 0, %s111
    %s126 = sphi 0, %s112
    %s130 = sphi 0, %s130
    %s132 = sphi 0, %s130
    %s133 = sphi 0, %s132
    %s147 = sphi 0, %s133
    %s153 = sphi 0, %s155
    %s156 = sphi 0, %s153
    %s157 = sphi 0, %s156
    %s173 = sphi 0, %s157
  $region4: #{tpu_custom_call.1} parent=0 // loop_header_branch
    %15 = sbr.rel (%p13) target = $region8
  $region5: #{tpu_custom_call.1} parent=0 // loop_body
    %s17 = ssub.s32 %s12, 1
    %s18 = ssub.s32 %s12, 2
    %s19 = sadd.s32 %s12, 1
    %s20 = ssub.s32 %s12, %s19
    %p21 = scmp.eq.s32.totalorder %s20, 0
    %s23 = sadd.s32 %s22, 1
    %s24 = scalar_select %p21, %s22, %s23
    %p27 = pneg %p21
    %p28 = scmp.eq.s32.totalorder %s12, 1
    %p29 = por %p27, %p28
    %p30 = scmp.ne.s32.totalorder %s22, %s25
    %p31 = scmp.eq.s32.totalorder %s12, 0
    %p32 = por %p30, %p31
    %p33 = scmp.ne.s32.totalorder %s22, %s25
    %p34 = scmp.eq.s32.totalorder %s17, 1
    %p35 = por %p33, %p34
    %p36 = scmp.ne.s32.totalorder %s25, %s26
    %p37 = scmp.eq.s32.totalorder %s17, 0
    %p38 = por %p36, %p37
    %p39 = scmp.ne.s32.totalorder %s25, %s26
    %p40 = scmp.eq.s32.totalorder %s18, 1
    %p41 = por %p39, %p40
    %p43 = scmp.ne.s32.totalorder %s26, %s42
    %p44 = scmp.eq.s32.totalorder %s18, 0
    %p45 = por %p43, %p44
    %s47 = sadd.s32 %s46, 1
    %p50 = scmp.eq.s32.totalorder %s12, 1
    %p51 = scmp.ne.s32.totalorder %s46, %s48
    %p52 = scmp.eq.s32.totalorder %s12, 0
    %p53 = por %p51, %p52
    %p54 = scmp.ne.s32.totalorder %s46, %s48
    %p55 = scmp.eq.s32.totalorder %s17, 1
    %p56 = por %p54, %p55
    %p57 = scmp.ne.s32.totalorder %s48, %s49
    %p58 = scmp.eq.s32.totalorder %s17, 0
    %p59 = por %p57, %p58
    %p60 = scmp.ne.s32.totalorder %s48, %s49
    %p61 = scmp.eq.s32.totalorder %s18, 1
    %p62 = por %p60, %p61
    %p64 = scmp.ne.s32.totalorder %s49, %s63
    %p65 = scmp.eq.s32.totalorder %s18, 0
    %p66 = por %p64, %p65
    %s68 = sadd.s32 %s67, 1
    %p71 = scmp.eq.s32.totalorder %s12, 1
    %p72 = scmp.ne.s32.totalorder %s67, %s69
    %p73 = scmp.eq.s32.totalorder %s12, 0
    %p74 = por %p72, %p73
    %p75 = scmp.ne.s32.totalorder %s67, %s69
    %p76 = scmp.eq.s32.totalorder %s17, 1
    %p77 = por %p75, %p76
    %p78 = scmp.ne.s32.totalorder %s69, %s70
    %p79 = scmp.eq.s32.totalorder %s17, 0
    %p80 = por %p78, %p79
    %p81 = scmp.ne.s32.totalorder %s69, %s70
    %p82 = scmp.eq.s32.totalorder %s18, 1
    %p83 = por %p81, %p82
    %p85 = scmp.ne.s32.totalorder %s70, %s84
    %p86 = scmp.eq.s32.totalorder %s18, 0
    %p87 = por %p85, %p86
    %s89 = sadd.s32 %s88, 1
    %p92 = scmp.eq.s32.totalorder %s12, 1
    %p93 = scmp.ne.s32.totalorder %s88, %s90
    %p94 = scmp.eq.s32.totalorder %s12, 0
    %p95 = por %p93, %p94
    %p96 = scmp.ne.s32.totalorder %s88, %s90
    %p97 = scmp.eq.s32.totalorder %s17, 1
    %p98 = por %p96, %p97
    %p99 = scmp.ne.s32.totalorder %s90, %s91
    %p100 = scmp.eq.s32.totalorder %s17, 0
    %p101 = por %p99, %p100
    %p102 = scmp.ne.s32.totalorder %s90, %s91
    %p103 = scmp.eq.s32.totalorder %s18, 1
    %p104 = por %p102, %p103
    %p106 = scmp.ne.s32.totalorder %s91, %s105
    %p107 = scmp.eq.s32.totalorder %s18, 0
    %p108 = por %p106, %p107
    %s110 = sadd.s32 %s109, 1
    %p113 = scmp.eq.s32.totalorder %s12, 1
    %p114 = scmp.ne.s32.totalorder %s109, %s111
    %p115 = scmp.eq.s32.totalorder %s12, 0
    %p116 = por %p114, %p115
    %p117 = scmp.ne.s32.totalorder %s109, %s111
    %p118 = scmp.eq.s32.totalorder %s17, 1
    %p119 = por %p117, %p118
    %p120 = scmp.ne.s32.totalorder %s111, %s112
    %p121 = scmp.eq.s32.totalorder %s17, 0
    %p122 = por %p120, %p121
    %p123 = scmp.ne.s32.totalorder %s111, %s112
    %p124 = scmp.eq.s32.totalorder %s18, 1
    %p125 = por %p123, %p124
    %p127 = scmp.ne.s32.totalorder %s112, %s126
    %p128 = scmp.eq.s32.totalorder %s18, 0
    %p129 = por %p127, %p128
    %s131 = sadd.s32 %s130, 1
    %p134 = scmp.eq.s32.totalorder %s12, 1
    %p135 = scmp.ne.s32.totalorder %s130, %s132
    %p136 = scmp.eq.s32.totalorder %s12, 0
    %p137 = por %p135, %p136
    %p138 = scmp.ne.s32.totalorder %s130, %s132
    %p139 = scmp.eq.s32.totalorder %s17, 1
    %p140 = por %p138, %p139
    %p141 = scmp.ne.s32.totalorder %s132, %s133
    %p142 = scmp.eq.s32.totalorder %s17, 0
    %p143 = por %p141, %p142
    %p144 = scmp.ne.s32.totalorder %s132, %s133
    %p145 = scmp.eq.s32.totalorder %s18, 1
    %p146 = por %p144, %p145
    %p148 = scmp.ne.s32.totalorder %s133, %s147
    %p149 = scmp.eq.s32.totalorder %s18, 0
    %p150 = por %p148, %p149
    %s151 = ssub.s32 %s12, %s19
    %p152 = scmp.eq.s32.totalorder %s151, 0
    %s154 = sadd.s32 %s153, 1
    %s155 = scalar_select %p152, %s153, %s154
    %p158 = pneg %p152
    %p159 = scmp.eq.s32.totalorder %s12, 1
    %p160 = por %p158, %p159
    %p161 = scmp.ne.s32.totalorder %s153, %s156
    %p162 = scmp.eq.s32.totalorder %s12, 0
    %p163 = por %p161, %p162
    %p164 = scmp.ne.s32.totalorder %s153, %s156
    %p165 = scmp.eq.s32.totalorder %s17, 1
    %p166 = por %p164, %p165
    %p167 = scmp.ne.s32.totalorder %s156, %s157
    %p168 = scmp.eq.s32.totalorder %s17, 0
    %p169 = por %p167, %p168
    %p170 = scmp.ne.s32.totalorder %s156, %s157
    %p171 = scmp.eq.s32.totalorder %s18, 1
    %p172 = por %p170, %p171
    %p174 = scmp.ne.s32.totalorder %s157, %s173
    %p175 = scmp.eq.s32.totalorder %s18, 0
    %p176 = por %p174, %p175
    %p177 = scmp.le.s32.totalorder 1, %s12
    %p178 = scmp.lt.s32.totalorder %s12, 3
    %p179 = pnand %p177, %p178
    %p180 = pneg %p179
    // Predicated region
    $region9: #{tpu_custom_call.1} parent=5 // pred_check
      _
    $region10: #{tpu_custom_call.1} parent=5 // pred_check_branch
      %182 = sbr.rel (%p179) target = $region12
    $region11: #{tpu_custom_call.1} parent=5 // pred_region
      %s183 = ssub.s32 %s12, 1
      // Predicated region
      $region13: #{tpu_custom_call.1} parent=11 // pred_check
        %p184 = pneg %p59
      $region14: #{tpu_custom_call.1} parent=11 // pred_check_branch
        %186 = sbr.rel (%p184) target = $region16
      $region15: #{tpu_custom_call.1} parent=11 // pred_region
        _
      $region16: #{tpu_custom_call.1} parent=11 // pred_fallthru
        _
      // Predicated region
      $region17: #{tpu_custom_call.1} parent=11 // pred_check
        %p187 = pneg %p80
      $region18: #{tpu_custom_call.1} parent=11 // pred_check_branch
        %189 = sbr.rel (%p187) target = $region20
      $region19: #{tpu_custom_call.1} parent=11 // pred_region
        _
      $region20: #{tpu_custom_call.1} parent=11 // pred_fallthru
        _
      // Predicated region
      $region21: #{tpu_custom_call.1} parent=11 // pred_check
        %p190 = pneg %p101
      $region22: #{tpu_custom_call.1} parent=11 // pred_check_branch
        %192 = sbr.rel (%p190) target = $region24
      $region23: #{tpu_custom_call.1} parent=11 // pred_region
        _
      $region24: #{tpu_custom_call.1} parent=11 // pred_fallthru
        _
      // Predicated region
      $region25: #{tpu_custom_call.1} parent=11 // pred_check
        %p193 = pneg %p122
      $region26: #{tpu_custom_call.1} parent=11 // pred_check_branch
        %195 = sbr.rel (%p193) target = $region28
      $region27: #{tpu_custom_call.1} parent=11 // pred_region
        _
      $region28: #{tpu_custom_call.1} parent=11 // pred_fallthru
        _
      // Predicated region
      $region29: #{tpu_custom_call.1} parent=11 // pred_check
        %p196 = pneg %p143
      $region30: #{tpu_custom_call.1} parent=11 // pred_check_branch
        %198 = sbr.rel (%p196) target = $region32
      $region31: #{tpu_custom_call.1} parent=11 // pred_region
        _
      $region32: #{tpu_custom_call.1} parent=11 // pred_fallthru
        _
    $region12: #{tpu_custom_call.1} parent=5 // pred_fallthru
      _
    %p199 = scmp.lt.s32.totalorder %s12, 2
    // Predicated region
    $region33: #{tpu_custom_call.1} parent=5 // pred_check
      %p200 = pneg %p199
    $region34: #{tpu_custom_call.1} parent=5 // pred_check_branch
      %202 = sbr.rel (%p200) target = $region36
    $region35: #{tpu_custom_call.1} parent=5 // pred_region
      // Predicated region
      $region37: #{tpu_custom_call.1} parent=35 // pred_check
        %p203 = pneg %p32
      $region38: #{tpu_custom_call.1} parent=35 // pred_check_branch
        %205 = sbr.rel (%p203) target = $region40
      $region39: #{tpu_custom_call.1} parent=35 // pred_region
        %s206 = smul.u32 6, %s12
        %p207 = scmp.lt.s32.totalorder %s206, 11
        %s208 = scalar_select %p207, %s206, 11
        %s209 = smul.addr %s208, 8
        %s210 = scalar_lea.vmem %s0, %s209
        %s211 = smul.u32 6, %s12
      $region40: #{tpu_custom_call.1} parent=35 // pred_fallthru
        _
    $region36: #{tpu_custom_call.1} parent=5 // pred_fallthru
      _
    %p212 = scmp.le.s32.totalorder 1, %s12
    %p213 = scmp.lt.s32.totalorder %s12, 3
    %p214 = pnand %p212, %p213
    %p215 = pneg %p214
    // Predicated region
    $region41: #{tpu_custom_call.1} parent=5 // pred_check
      _
    $region42: #{tpu_custom_call.1} parent=5 // pred_check_branch
      %217 = sbr.rel (%p214) target = $region44
    $region43: #{tpu_custom_call.1} parent=5 // pred_region
      %s218 = ssub.s32 %s12, 1
      %s219 = smul.u32 6, %s17
      %p220 = scmp.lt.s32.totalorder %s219, 11
      %s221 = scalar_select %p220, %s219, 11
      %s222 = smul.addr %s221, 8
      %s223 = scalar_lea.vmem %s0, %s222
      %p224 = pneg %p38
      %p225 = pneg %p35
      %p226 = pneg %p59
      %p227 = pneg %p56
      %p228 = pneg %p80
      %p229 = pneg %p77
      %p230 = pneg %p101
      %p231 = pneg %p98
      %p232 = pneg %p122
      %p233 = pneg %p119
      %p234 = pneg %p143
      %p235 = pneg %p140
      %p236 = pneg %p169
      %p237 = pneg %p166
      %s238 = smul.u32 6, %s17
      %p239 = scmp.lt.s32.totalorder %s238, 11
      %s240 = scalar_select %p239, %s238, 11
      %s241 = smul.addr %s240, 8
      %s242 = scalar_lea.vmem %s6, %s241
      %s243 = smul.u32 6, %s17
      %p244 = scmp.lt.s32.totalorder %s243, 11
      %s245 = scalar_select %p244, %s243, 11
      %s246 = smul.addr %s245, 8
      %s247 = scalar_lea.vmem %s0, %s246
      %s248 = smul.u32 6, %s17
      %s249 = smul.u32 6, %s17
      %p250 = scmp.lt.s32.totalorder %s249, 11
      %s251 = scalar_select %p250, %s249, 11
      %s252 = smul.addr %s251, 8
      %s253 = scalar_lea.vmem %s6, %s252
      %s254 = smul.u32 6, %s17
      %v255 = vld [vmem:[%s247] sm:$0xff]
      %v256 = vld [vmem:[%s247 + $0x8] sm:$0xff]
      %v257 = vld [vmem:[%s247 + $0x10] sm:$0xff]
      %v258 = vld [vmem:[%s247 + $0x18] sm:$0xff]
      %v259 = vld [vmem:[%s247 + $0x20] sm:$0xff]
      %v260 = vld [vmem:[%s247 + $0x28] sm:$0xff]
      %v261 = vld [vmem:[%s1] sm:$0xff]
      %v262 = vld [vmem:[%s1 + $0x8] sm:$0xff]
      %v263 = vld [vmem:[%s1 + $0x10] sm:$0xff]
      %v264 = vld [vmem:[%s1 + $0x18] sm:$0xff]
      %v265 = vld [vmem:[%s1 + $0x20] sm:$0xff]
      %v266 = vld [vmem:[%s1 + $0x28] sm:$0xff]
      %v267 = vld [vmem:[%s2] sm:$0xff]
      %v268 = vld [vmem:[%s2 + $0x8] sm:$0xff]
      %v269 = vld [vmem:[%s2 + $0x10] sm:$0xff]
      %v270 = vld [vmem:[%s2 + $0x18] sm:$0xff]
      %v271 = vld [vmem:[%s3] sm:$0x1]
      %v273 = vperm.slane %v271, 0
      %vm275 = vcmask 261120
      %v277 = vsel %vm275, %v255, 0
      %v280 = vsel %vm275, %v256, 0
      %v283 = vsel %vm275, %v257, 0
      %v286 = vsel %vm275, %v258, 0
      %v289 = vsel %vm275, %v259, 0
      %v292 = vsel %vm275, %v260, 0
      %294 = vmatpush.msra.mxu0 0.0
      %295 = vmatpush.msra.mxu0 0.0
      %296 = vmatpush.msra.mxu0 0.0
      %297 = vmatpush.msra.mxu0 0.0
      %298 = vmatpush.msra.mxu0 0.0
      %299 = vmatpush.msra.mxu0 0.0
      %300 = vmatpush.msra.mxu0 0.0
      %301 = vmatpush.msra.mxu0 0.0
      %302 = vmatpush.msra.mxu0 0.0
      %303 = vmatpush.msra.mxu0 0.0
      %304 = vmatpush.msra.mxu0 0.0
      %305 = vmatpush.msra.mxu0 0.0
      %306 = vmatpush.msra.mxu0 %v270
      %307 = vmatpush.msra.mxu0 %v269
      %308 = vmatpush.msra.mxu0 %v268
      %309 = vmatpush.msra.mxu0 %v267
      %310 = vmatmul.f32.gmra.mxu0 %v277
      %v311 = vpop.f32.mrf.mxu0
      %v312 = vadd.f32 %v273, %v311
      %313 = vmatmul.f32.gmra.mxu0 %v280
      %v314 = vpop.f32.mrf.mxu0
      %v315 = vadd.f32 %v273, %v314
      %316 = vmatmul.f32.gmra.mxu0 %v283
      %v317 = vpop.f32.mrf.mxu0
      %v318 = vadd.f32 %v273, %v317
      %319 = vmatmul.f32.gmra.mxu0 %v286
      %v320 = vpop.f32.mrf.mxu0
      %v321 = vadd.f32 %v273, %v320
      %322 = vmatmul.f32.gmra.mxu0 %v289
      %v323 = vpop.f32.mrf.mxu0
      %v324 = vadd.f32 %v273, %v323
      %325 = vmatmul.f32.gmra.mxu0 %v292
      %v326 = vpop.f32.mrf.mxu0
      %v327 = vadd.f32 %v273, %v326
      %328 = vdwg.mxu0
      %335 = vrot.lane.b32.xlu0 %v312, 96
      %v336 = vpop.permute.xlu0 %335
      %337 = vrot.lane.b32.xlu0 %v315, 96
      %v338 = vpop.permute.xlu0 %337
      %339 = vrot.lane.b32.xlu0 %v318, 96
      %v340 = vpop.permute.xlu0 %339
      %341 = vrot.lane.b32.xlu0 %v321, 96
      %v342 = vpop.permute.xlu0 %341
      %343 = vrot.lane.b32.xlu0 %v324, 96
      %v344 = vpop.permute.xlu0 %343
      %345 = vrot.lane.b32.xlu0 %v327, 96
      %v346 = vpop.permute.xlu0 %345
      %vm347 = vcmask 64512
      %v348 = vsel %vm347, %v312, 0
      %v350 = vsel %vm347, %v315, 0
      %v352 = vsel %vm347, %v318, 0
      %v354 = vsel %vm347, %v321, 0
      %v356 = vsel %vm347, %v324, 0
      %v358 = vsel %vm347, %v327, 0
      %v360 = vsel %vm347, %v336, 0
      %v362 = vsel %vm347, %v338, 0
      %v364 = vsel %vm347, %v340, 0
      %v366 = vsel %vm347, %v342, 0
      %v368 = vsel %vm347, %v344, 0
      %v370 = vsel %vm347, %v346, 0
      %372 = vmatpush.xpose.msra.mxu0 0.0
      %373 = vmatpush.xpose.msra.mxu0 0.0
      %374 = vmatpush.xpose.msra.mxu0 0.0
      %375 = vmatpush.xpose.msra.mxu0 0.0
      %376 = vmatpush.xpose.msra.mxu0 0.0
      %377 = vmatpush.xpose.msra.mxu0 0.0
      %378 = vmatpush.xpose.msra.mxu0 0.0
      %379 = vmatpush.xpose.msra.mxu0 0.0
      %380 = vmatpush.xpose.msra.mxu0 0.0
      %381 = vmatpush.xpose.msra.mxu0 0.0
      %382 = vmatpush.xpose.msra.mxu0 %v370
      %383 = vmatpush.xpose.msra.mxu0 %v368
      %384 = vmatpush.xpose.msra.mxu0 %v366
      %385 = vmatpush.xpose.msra.mxu0 %v364
      %386 = vmatpush.xpose.msra.mxu0 %v362
      %387 = vmatpush.xpose.msra.mxu0 %v360
      %388 = vmatmul.f32.gmra.mxu0 %v348
      %v389 = vpop.f32.mrf.mxu0
      %v390 = vadd.f32 %v261, %v389
      %391 = vmatmul.f32.gmra.mxu0 %v350
      %v392 = vpop.f32.mrf.mxu0
      %v393 = vadd.f32 %v262, %v392
      %394 = vmatmul.f32.gmra.mxu0 %v352
      %v395 = vpop.f32.mrf.mxu0
      %v396 = vadd.f32 %v263, %v395
      %397 = vmatmul.f32.gmra.mxu0 %v354
      %v398 = vpop.f32.mrf.mxu0
      %v399 = vadd.f32 %v264, %v398
      %400 = vmatmul.f32.gmra.mxu0 %v356
      %v401 = vpop.f32.mrf.mxu0
      %v402 = vadd.f32 %v265, %v401
      %403 = vmatmul.f32.gmra.mxu0 %v358
      %v404 = vpop.f32.mrf.mxu0
      %v405 = vadd.f32 %v266, %v404
      %406 = vdwg.mxu0
      %vm407 = vcmask 392192
      %v408 = vsel %vm407, %v390, -inf
      %409 = vmax.xlane.f32.xlu0 %v408
      %v410 = vpop.xlane.xlu0 %409
      %v411 = vsel %vm407, %v393, -inf
      %412 = vmax.xlane.f32.xlu0 %v411
      %v413 = vpop.xlane.xlu0 %412
      %v414 = vsel %vm407, %v396, -inf
      %415 = vmax.xlane.f32.xlu0 %v414
      %v416 = vpop.xlane.xlu0 %415
      %v417 = vsel %vm407, %v399, -inf
      %418 = vmax.xlane.f32.xlu0 %v417
      %v419 = vpop.xlane.xlu0 %418
      %v420 = vsel %vm407, %v402, -inf
      %421 = vmax.xlane.f32.xlu0 %v420
      %v422 = vpop.xlane.xlu0 %421
      %v423 = vsel %vm407, %v405, -inf
      %424 = vmax.xlane.f32.xlu0 %v423
      %v425 = vpop.xlane.xlu0 %424
      %v426 = vsub.f32 %v390, %v410
      %v427 = vsub.f32 %v393, %v413
      %v428 = vsub.f32 %v396, %v416
      %v429 = vsub.f32 %v399, %v419
      %v430 = vsub.f32 %v402, %v422
      %v431 = vsub.f32 %v405, %v425
      %v432 = vmul.f32 %v426, 1.442695
      %v433 = vpow.pop %v432
      %v434 = vmul.f32 %v427, 1.442695
      %v435 = vpow.pop %v434
      %v436 = vmul.f32 %v428, 1.442695
      %v437 = vpow.pop %v436
      %v438 = vmul.f32 %v429, 1.442695
      %v439 = vpow.pop %v438
      %v440 = vmul.f32 %v430, 1.442695
      %v441 = vpow.pop %v440
      %v442 = vmul.f32 %v431, 1.442695
      %v443 = vpow.pop %v442
      %v444 = vsel %vm407, %v433, 0.0
      %445 = vadd.xlane.f32.xlu0 %v444
      %v446 = vpop.xlane.xlu0 %445
      %v447 = vsel %vm407, %v435, 0.0
      %448 = vadd.xlane.f32.xlu0 %v447
      %v449 = vpop.xlane.xlu0 %448
      %v450 = vsel %vm407, %v437, 0.0
      %451 = vadd.xlane.f32.xlu0 %v450
      %v452 = vpop.xlane.xlu0 %451
      %v453 = vsel %vm407, %v439, 0.0
      %454 = vadd.xlane.f32.xlu0 %v453
      %v455 = vpop.xlane.xlu0 %454
      %v456 = vsel %vm407, %v441, 0.0
      %457 = vadd.xlane.f32.xlu0 %v456
      %v458 = vpop.xlane.xlu0 %457
      %v459 = vsel %vm407, %v443, 0.0
      %460 = vadd.xlane.f32.xlu0 %v459
      %v461 = vpop.xlane.xlu0 %460
      %v462 = vrcp.pop %v446
      %v463 = vrcp.pop %v449
      %v464 = vrcp.pop %v452
      %v465 = vrcp.pop %v455
      %v466 = vrcp.pop %v458
      %v467 = vrcp.pop %v461
      %v468 = vmul.f32 %v433, %v462
      %v469 = vmul.f32 %v435, %v463
      %v470 = vmul.f32 %v437, %v464
      %v471 = vmul.f32 %v439, %v465
      %v472 = vmul.f32 %v441, %v466
      %v473 = vmul.f32 %v443, %v467
      %474 = vrot.lane.b32.xlu0 %v312, 64
      %v475 = vpop.permute.xlu0 %474
      %476 = vrot.lane.b32.xlu0 %v315, 64
      %v477 = vpop.permute.xlu0 %476
      %478 = vrot.lane.b32.xlu0 %v318, 64
      %v479 = vpop.permute.xlu0 %478
      %480 = vrot.lane.b32.xlu0 %v321, 64
      %v481 = vpop.permute.xlu0 %480
      %482 = vrot.lane.b32.xlu0 %v324, 64
      %v483 = vpop.permute.xlu0 %482
      %484 = vrot.lane.b32.xlu0 %v327, 64
      %v485 = vpop.permute.xlu0 %484
      %v493 = vsel %vm407, %v468, 0
      %v496 = vsel %vm407, %v469, 0
      %v499 = vsel %vm407, %v470, 0
      %v502 = vsel %vm407, %v471, 0
      %v505 = vsel %vm407, %v472, 0
      %v508 = vsel %vm407, %v473, 0
      %510 = vmatpush.msra.mxu0 0.0
      %511 = vmatpush.msra.mxu0 0.0
      %512 = vmatpush.msra.mxu0 0.0
      %513 = vmatpush.msra.mxu0 0.0
      %514 = vmatpush.msra.mxu0 0.0
      %515 = vmatpush.msra.mxu0 0.0
      %516 = vmatpush.msra.mxu0 0.0
      %517 = vmatpush.msra.mxu0 0.0
      %518 = vmatpush.msra.mxu0 0.0
      %519 = vmatpush.msra.mxu0 0.0
      %520 = vmatpush.msra.mxu0 %v485
      %521 = vmatpush.msra.mxu0 %v483
      %522 = vmatpush.msra.mxu0 %v481
      %523 = vmatpush.msra.mxu0 %v479
      %524 = vmatpush.msra.mxu0 %v477
      %525 = vmatpush.msra.mxu0 %v475
      %526 = vmatmul.f32.gmra.mxu0 %v493
      %v527 = vpop.f32.mrf.mxu0
      %v528 = vadd.f32 0.0, %v527
      %529 = vmatmul.f32.gmra.mxu0 %v496
      %v530 = vpop.f32.mrf.mxu0
      %v531 = vadd.f32 0.0, %v530
      %532 = vmatmul.f32.gmra.mxu0 %v499
      %v533 = vpop.f32.mrf.mxu0
      %v534 = vadd.f32 0.0, %v533
      %535 = vmatmul.f32.gmra.mxu0 %v502
      %v536 = vpop.f32.mrf.mxu0
      %v537 = vadd.f32 0.0, %v536
      %538 = vmatmul.f32.gmra.mxu0 %v505
      %v539 = vpop.f32.mrf.mxu0
      %v540 = vadd.f32 0.0, %v539
      %541 = vmatmul.f32.gmra.mxu0 %v508
      %v542 = vpop.f32.mrf.mxu0
      %v543 = vadd.f32 0.0, %v542
      %544 = vdwg.mxu0
      %v545 = vld [vmem:[%s4] sm:$0xff]
      %546 = vrot.lane.b32.xlu0 %v312, 120
      %v547 = vpop.permute.xlu0 %546
      %548 = vrot.lane.b32.xlu0 %v315, 120
      %v549 = vpop.permute.xlu0 %548
      %550 = vrot.lane.b32.xlu0 %v318, 120
      %v551 = vpop.permute.xlu0 %550
      %552 = vrot.lane.b32.xlu0 %v321, 120
      %v553 = vpop.permute.xlu0 %552
      %554 = vrot.lane.b32.xlu0 %v324, 120
      %v555 = vpop.permute.xlu0 %554
      %556 = vrot.lane.b32.xlu0 %v327, 120
      %v557 = vpop.permute.xlu0 %556
      %558 = vrot.lane.b32.xlu0 %v312, 88
      %v559 = vpop.permute.xlu0 %558
      %560 = vrot.lane.b32.xlu0 %v315, 88
      %v561 = vpop.permute.xlu0 %560
      %562 = vrot.lane.b32.xlu0 %v318, 88
      %v563 = vpop.permute.xlu0 %562
      %564 = vrot.lane.b32.xlu0 %v321, 88
      %v565 = vpop.permute.xlu0 %564
      %566 = vrot.lane.b32.xlu0 %v324, 88
      %v567 = vpop.permute.xlu0 %566
      %568 = vrot.lane.b32.xlu0 %v327, 88
      %v569 = vpop.permute.xlu0 %568
      %v570 = vsel %vm347, %v547, 0
      %v572 = vsel %vm347, %v549, 0
      %v574 = vsel %vm347, %v551, 0
      %v576 = vsel %vm347, %v553, 0
      %v578 = vsel %vm347, %v555, 0
      %v580 = vsel %vm347, %v557, 0
      %v582 = vsel %vm347, %v559, 0
      %v584 = vsel %vm347, %v561, 0
      %v586 = vsel %vm347, %v563, 0
      %v588 = vsel %vm347, %v565, 0
      %v590 = vsel %vm347, %v567, 0
      %v592 = vsel %vm347, %v569, 0
      %594 = vmatpush.xpose.msra.mxu0 0.0
      %595 = vmatpush.xpose.msra.mxu0 0.0
      %596 = vmatpush.xpose.msra.mxu0 0.0
      %597 = vmatpush.xpose.msra.mxu0 0.0
      %598 = vmatpush.xpose.msra.mxu0 0.0
      %599 = vmatpush.xpose.msra.mxu0 0.0
      %600 = vmatpush.xpose.msra.mxu0 0.0
      %601 = vmatpush.xpose.msra.mxu0 0.0
      %602 = vmatpush.xpose.msra.mxu0 0.0
      %603 = vmatpush.xpose.msra.mxu0 0.0
      %604 = vmatpush.xpose.msra.mxu0 %v592
      %605 = vmatpush.xpose.msra.mxu0 %v590
      %606 = vmatpush.xpose.msra.mxu0 %v588
      %607 = vmatpush.xpose.msra.mxu0 %v586
      %608 = vmatpush.xpose.msra.mxu0 %v584
      %609 = vmatpush.xpose.msra.mxu0 %v582
      %610 = vmatmul.f32.gmra.mxu0 %v570
      %v611 = vpop.f32.mrf.mxu0
      %v612 = vadd.f32 %v261, %v611
      %613 = vmatmul.f32.gmra.mxu0 %v572
      %v614 = vpop.f32.mrf.mxu0
      %v615 = vadd.f32 %v262, %v614
      %616 = vmatmul.f32.gmra.mxu0 %v574
      %v617 = vpop.f32.mrf.mxu0
      %v618 = vadd.f32 %v263, %v617
      %619 = vmatmul.f32.gmra.mxu0 %v576
      %v620 = vpop.f32.mrf.mxu0
      %v621 = vadd.f32 %v264, %v620
      %622 = vmatmul.f32.gmra.mxu0 %v578
      %v623 = vpop.f32.mrf.mxu0
      %v624 = vadd.f32 %v265, %v623
      %625 = vmatmul.f32.gmra.mxu0 %v580
      %v626 = vpop.f32.mrf.mxu0
      %v627 = vadd.f32 %v266, %v626
      %628 = vdwg.mxu0
      %v629 = vsel %vm407, %v612, -inf
      %630 = vmax.xlane.f32.xlu0 %v629
      %v631 = vpop.xlane.xlu0 %630
      %v632 = vsel %vm407, %v615, -inf
      %633 = vmax.xlane.f32.xlu0 %v632
      %v634 = vpop.xlane.xlu0 %633
      %v635 = vsel %vm407, %v618, -inf
      %636 = vmax.xlane.f32.xlu0 %v635
      %v637 = vpop.xlane.xlu0 %636
      %v638 = vsel %vm407, %v621, -inf
      %639 = vmax.xlane.f32.xlu0 %v638
      %v640 = vpop.xlane.xlu0 %639
      %v641 = vsel %vm407, %v624, -inf
      %642 = vmax.xlane.f32.xlu0 %v641
      %v643 = vpop.xlane.xlu0 %642
      %v644 = vsel %vm407, %v627, -inf
      %645 = vmax.xlane.f32.xlu0 %v644
      %v646 = vpop.xlane.xlu0 %645
      %v647 = vsub.f32 %v612, %v631
      %v648 = vsub.f32 %v615, %v634
      %v649 = vsub.f32 %v618, %v637
      %v650 = vsub.f32 %v621, %v640
      %v651 = vsub.f32 %v624, %v643
      %v652 = vsub.f32 %v627, %v646
      %v653 = vmul.f32 %v647, 1.442695
      %v654 = vpow.pop %v653
      %v655 = vmul.f32 %v648, 1.442695
      %v656 = vpow.pop %v655
      %v657 = vmul.f32 %v649, 1.442695
      %v658 = vpow.pop %v657
      %v659 = vmul.f32 %v650, 1.442695
      %v660 = vpow.pop %v659
      %v661 = vmul.f32 %v651, 1.442695
      %v662 = vpow.pop %v661
      %v663 = vmul.f32 %v652, 1.442695
      %v664 = vpow.pop %v663
      %v665 = vsel %vm407, %v654, 0.0
      %666 = vadd.xlane.f32.xlu0 %v665
      %v667 = vpop.xlane.xlu0 %666
      %v668 = vsel %vm407, %v656, 0.0
      %669 = vadd.xlane.f32.xlu0 %v668
      %v670 = vpop.xlane.xlu0 %669
      %v671 = vsel %vm407, %v658, 0.0
      %672 = vadd.xlane.f32.xlu0 %v671
      %v673 = vpop.xlane.xlu0 %672
      %v674 = vsel %vm407, %v660, 0.0
      %675 = vadd.xlane.f32.xlu0 %v674
      %v676 = vpop.xlane.xlu0 %675
      %v677 = vsel %vm407, %v662, 0.0
      %678 = vadd.xlane.f32.xlu0 %v677
      %v679 = vpop.xlane.xlu0 %678
      %v680 = vsel %vm407, %v664, 0.0
      %681 = vadd.xlane.f32.xlu0 %v680
      %v682 = vpop.xlane.xlu0 %681
      %v683 = vrcp.pop %v667
      %v684 = vrcp.pop %v670
      %v685 = vrcp.pop %v673
      %v686 = vrcp.pop %v676
      %v687 = vrcp.pop %v679
      %v688 = vrcp.pop %v682
      %v689 = vmul.f32 %v654, %v683
      %v690 = vmul.f32 %v656, %v684
      %v691 = vmul.f32 %v658, %v685
      %v692 = vmul.f32 %v660, %v686
      %v693 = vmul.f32 %v662, %v687
      %v694 = vmul.f32 %v664, %v688
      %695 = vrot.lane.b32.xlu0 %v312, 56
      %v696 = vpop.permute.xlu0 %695
      %697 = vrot.lane.b32.xlu0 %v315, 56
      %v698 = vpop.permute.xlu0 %697
      %699 = vrot.lane.b32.xlu0 %v318, 56
      %v700 = vpop.permute.xlu0 %699
      %701 = vrot.lane.b32.xlu0 %v321, 56
      %v702 = vpop.permute.xlu0 %701
      %703 = vrot.lane.b32.xlu0 %v324, 56
      %v704 = vpop.permute.xlu0 %703
      %705 = vrot.lane.b32.xlu0 %v327, 56
      %v706 = vpop.permute.xlu0 %705
      %v714 = vsel %vm407, %v689, 0
      %v717 = vsel %vm407, %v690, 0
      %v720 = vsel %vm407, %v691, 0
      %v723 = vsel %vm407, %v692, 0
      %v726 = vsel %vm407, %v693, 0
      %v729 = vsel %vm407, %v694, 0
      %731 = vmatpush.msra.mxu0 0.0
      %732 = vmatpush.msra.mxu0 0.0
      %733 = vmatpush.msra.mxu0 0.0
      %734 = vmatpush.msra.mxu0 0.0
      %735 = vmatpush.msra.mxu0 0.0
      %736 = vmatpush.msra.mxu0 0.0
      %737 = vmatpush.msra.mxu0 0.0
      %738 = vmatpush.msra.mxu0 0.0
      %739 = vmatpush.msra.mxu0 0.0
      %740 = vmatpush.msra.mxu0 0.0
      %741 = vmatpush.msra.mxu0 %v706
      %742 = vmatpush.msra.mxu0 %v704
      %743 = vmatpush.msra.mxu0 %v702
      %744 = vmatpush.msra.mxu0 %v700
      %745 = vmatpush.msra.mxu0 %v698
      %746 = vmatpush.msra.mxu0 %v696
      %747 = vmatmul.f32.gmra.mxu0 %v714
      %v748 = vpop.f32.mrf.mxu0
      %v749 = vadd.f32 0.0, %v748
      %750 = vmatmul.f32.gmra.mxu0 %v717
      %v751 = vpop.f32.mrf.mxu0
      %v752 = vadd.f32 0.0, %v751
      %753 = vmatmul.f32.gmra.mxu0 %v720
      %v754 = vpop.f32.mrf.mxu0
      %v755 = vadd.f32 0.0, %v754
      %756 = vmatmul.f32.gmra.mxu0 %v723
      %v757 = vpop.f32.mrf.mxu0
      %v758 = vadd.f32 0.0, %v757
      %759 = vmatmul.f32.gmra.mxu0 %v726
      %v760 = vpop.f32.mrf.mxu0
      %v761 = vadd.f32 0.0, %v760
      %762 = vmatmul.f32.gmra.mxu0 %v729
      %v763 = vpop.f32.mrf.mxu0
      %v764 = vadd.f32 0.0, %v763
      %765 = vdwg.mxu0
      %v766 = vld [vmem:[%s4 + $0x8] sm:$0xff]
      %v768 = vsel %vm347, %v749, 0
      %v771 = vsel %vm347, %v752, 0
      %v774 = vsel %vm347, %v755, 0
      %v777 = vsel %vm347, %v758, 0
      %v780 = vsel %vm347, %v761, 0
      %v783 = vsel %vm347, %v764, 0
      %785 = vmatpush.msra.mxu0 0.0
      %786 = vmatpush.msra.mxu0 0.0
      %787 = vmatpush.msra.mxu0 0.0
      %788 = vmatpush.msra.mxu0 0.0
      %789 = vmatpush.msra.mxu0 0.0
      %790 = vmatpush.msra.mxu0 0.0
      %791 = vmatpush.msra.mxu0 0.0
      %792 = vmatpush.msra.mxu0 0.0
      %793 = vmatpush.msra.mxu0 0.0
      %794 = vmatpush.msra.mxu0 0.0
      %795 = vmatpush.msra.mxu0 0.0
      %796 = vmatpush.msra.mxu0 0.0
      %797 = vmatpush.msra.mxu0 0.0
      %798 = vmatpush.msra.mxu0 0.0
      %799 = vmatpush.msra.mxu0 0.0
      %800 = vmatpush.msra.mxu0 %v766
      %801 = vmatmul.f32.gmra.mxu0 %v768
      %v802 = vpop.f32.mrf.mxu0
      %v803 = vadd.f32 0.0, %v802
      %804 = vmatmul.f32.gmra.mxu0 %v771
      %v805 = vpop.f32.mrf.mxu0
      %v806 = vadd.f32 0.0, %v805
      %807 = vmatmul.f32.gmra.mxu0 %v774
      %v808 = vpop.f32.mrf.mxu0
      %v809 = vadd.f32 0.0, %v808
      %810 = vmatmul.f32.gmra.mxu0 %v777
      %v811 = vpop.f32.mrf.mxu0
      %v812 = vadd.f32 0.0, %v811
      %813 = vmatmul.f32.gmra.mxu0 %v780
      %v814 = vpop.f32.mrf.mxu0
      %v815 = vadd.f32 0.0, %v814
      %816 = vmatmul.f32.gmra.mxu0 %v783
      %v817 = vpop.f32.mrf.mxu0
      %v818 = vadd.f32 0.0, %v817
      %819 = vdwg.mxu0
      %v821 = vsel %vm347, %v528, 0
      %v824 = vsel %vm347, %v531, 0
      %v827 = vsel %vm347, %v534, 0
      %v830 = vsel %vm347, %v537, 0
      %v833 = vsel %vm347, %v540, 0
      %v836 = vsel %vm347, %v543, 0
      %838 = vmatpush.msra.mxu0 0.0
      %839 = vmatpush.msra.mxu0 0.0
      %840 = vmatpush.msra.mxu0 0.0
      %841 = vmatpush.msra.mxu0 0.0
      %842 = vmatpush.msra.mxu0 0.0
      %843 = vmatpush.msra.mxu0 0.0
      %844 = vmatpush.msra.mxu0 0.0
      %845 = vmatpush.msra.mxu0 0.0
      %846 = vmatpush.msra.mxu0 0.0
      %847 = vmatpush.msra.mxu0 0.0
      %848 = vmatpush.msra.mxu0 0.0
      %849 = vmatpush.msra.mxu0 0.0
      %850 = vmatpush.msra.mxu0 0.0
      %851 = vmatpush.msra.mxu0 0.0
      %852 = vmatpush.msra.mxu0 0.0
      %853 = vmatpush.msra.mxu0 %v545
      %854 = vmatmul.f32.gmra.mxu0 %v821
      %v855 = vpop.f32.mrf.mxu0
      %v856 = vadd.f32 %v803, %v855
      %857 = vmatmul.f32.gmra.mxu0 %v824
      %v858 = vpop.f32.mrf.mxu0
      %v859 = vadd.f32 %v806, %v858
      %860 = vmatmul.f32.gmra.mxu0 %v827
      %v861 = vpop.f32.mrf.mxu0
      %v862 = vadd.f32 %v809, %v861
      %863 = vmatmul.f32.gmra.mxu0 %v830
      %v864 = vpop.f32.mrf.mxu0
      %v865 = vadd.f32 %v812, %v864
      %866 = vmatmul.f32.gmra.mxu0 %v833
      %v867 = vpop.f32.mrf.mxu0
      %v868 = vadd.f32 %v815, %v867
      %869 = vmatmul.f32.gmra.mxu0 %v836
      %v870 = vpop.f32.mrf.mxu0
      %v871 = vadd.f32 %v818, %v870
      %872 = vdwg.mxu0
      %873 = vrot.lane.b32.xlu0 %v312, 112
      %v874 = vpop.permute.xlu0 %873
      %875 = vrot.lane.b32.xlu0 %v315, 112
      %v876 = vpop.permute.xlu0 %875
      %877 = vrot.lane.b32.xlu0 %v318, 112
      %v878 = vpop.permute.xlu0 %877
      %879 = vrot.lane.b32.xlu0 %v321, 112
      %v880 = vpop.permute.xlu0 %879
      %881 = vrot.lane.b32.xlu0 %v324, 112
      %v882 = vpop.permute.xlu0 %881
      %883 = vrot.lane.b32.xlu0 %v327, 112
      %v884 = vpop.permute.xlu0 %883
      %885 = vrot.lane.b32.xlu0 %v312, 80
      %v886 = vpop.permute.xlu0 %885
      %887 = vrot.lane.b32.xlu0 %v315, 80
      %v888 = vpop.permute.xlu0 %887
      %889 = vrot.lane.b32.xlu0 %v318, 80
      %v890 = vpop.permute.xlu0 %889
      %891 = vrot.lane.b32.xlu0 %v321, 80
      %v892 = vpop.permute.xlu0 %891
      %893 = vrot.lane.b32.xlu0 %v324, 80
      %v894 = vpop.permute.xlu0 %893
      %895 = vrot.lane.b32.xlu0 %v327, 80
      %v896 = vpop.permute.xlu0 %895
      %v897 = vsel %vm347, %v874, 0
      %v899 = vsel %vm347, %v876, 0
      %v901 = vsel %vm347, %v878, 0
      %v903 = vsel %vm347, %v880, 0
      %v905 = vsel %vm347, %v882, 0
      %v907 = vsel %vm347, %v884, 0
      %v909 = vsel %vm347, %v886, 0
      %v911 = vsel %vm347, %v888, 0
      %v913 = vsel %vm347, %v890, 0
      %v915 = vsel %vm347, %v892, 0
      %v917 = vsel %vm347, %v894, 0
      %v919 = vsel %vm347, %v896, 0
      %921 = vmatpush.xpose.msra.mxu0 0.0
      %922 = vmatpush.xpose.msra.mxu0 0.0
      %923 = vmatpush.xpose.msra.mxu0 0.0
      %924 = vmatpush.xpose.msra.mxu0 0.0
      %925 = vmatpush.xpose.msra.mxu0 0.0
      %926 = vmatpush.xpose.msra.mxu0 0.0
      %927 = vmatpush.xpose.msra.mxu0 0.0
      %928 = vmatpush.xpose.msra.mxu0 0.0
      %929 = vmatpush.xpose.msra.mxu0 0.0
      %930 = vmatpush.xpose.msra.mxu0 0.0
      %931 = vmatpush.xpose.msra.mxu0 %v919
      %932 = vmatpush.xpose.msra.mxu0 %v917
      %933 = vmatpush.xpose.msra.mxu0 %v915
      %934 = vmatpush.xpose.msra.mxu0 %v913
      %935 = vmatpush.xpose.msra.mxu0 %v911
      %936 = vmatpush.xpose.msra.mxu0 %v909
      %937 = vmatmul.f32.gmra.mxu0 %v897
      %v938 = vpop.f32.mrf.mxu0
      %v939 = vadd.f32 %v261, %v938
      %940 = vmatmul.f32.gmra.mxu0 %v899
      %v941 = vpop.f32.mrf.mxu0
      %v942 = vadd.f32 %v262, %v941
      %943 = vmatmul.f32.gmra.mxu0 %v901
      %v944 = vpop.f32.mrf.mxu0
      %v945 = vadd.f32 %v263, %v944
      %946 = vmatmul.f32.gmra.mxu0 %v903
      %v947 = vpop.f32.mrf.mxu0
      %v948 = vadd.f32 %v264, %v947
      %949 = vmatmul.f32.gmra.mxu0 %v905
      %v950 = vpop.f32.mrf.mxu0
      %v951 = vadd.f32 %v265, %v950
      %952 = vmatmul.f32.gmra.mxu0 %v907
      %v953 = vpop.f32.mrf.mxu0
      %v954 = vadd.f32 %v266, %v953
      %955 = vdwg.mxu0
      %v956 = vsel %vm407, %v939, -inf
      %957 = vmax.xlane.f32.xlu0 %v956
      %v958 = vpop.xlane.xlu0 %957
      %v959 = vsel %vm407, %v942, -inf
      %960 = vmax.xlane.f32.xlu0 %v959
      %v961 = vpop.xlane.xlu0 %960
      %v962 = vsel %vm407, %v945, -inf
      %963 = vmax.xlane.f32.xlu0 %v962
      %v964 = vpop.xlane.xlu0 %963
      %v965 = vsel %vm407, %v948, -inf
      %966 = vmax.xlane.f32.xlu0 %v965
      %v967 = vpop.xlane.xlu0 %966
      %v968 = vsel %vm407, %v951, -inf
      %969 = vmax.xlane.f32.xlu0 %v968
      %v970 = vpop.xlane.xlu0 %969
      %v971 = vsel %vm407, %v954, -inf
      %972 = vmax.xlane.f32.xlu0 %v971
      %v973 = vpop.xlane.xlu0 %972
      %v974 = vsub.f32 %v939, %v958
      %v975 = vsub.f32 %v942, %v961
      %v976 = vsub.f32 %v945, %v964
      %v977 = vsub.f32 %v948, %v967
      %v978 = vsub.f32 %v951, %v970
      %v979 = vsub.f32 %v954, %v973
      %v980 = vmul.f32 %v974, 1.442695
      %v981 = vpow.pop %v980
      %v982 = vmul.f32 %v975, 1.442695
      %v983 = vpow.pop %v982
      %v984 = vmul.f32 %v976, 1.442695
      %v985 = vpow.pop %v984
      %v986 = vmul.f32 %v977, 1.442695
      %v987 = vpow.pop %v986
      %v988 = vmul.f32 %v978, 1.442695
      %v989 = vpow.pop %v988
      %v990 = vmul.f32 %v979, 1.442695
      %v991 = vpow.pop %v990
      %v992 = vsel %vm407, %v981, 0.0
      %993 = vadd.xlane.f32.xlu0 %v992
      %v994 = vpop.xlane.xlu0 %993
      %v995 = vsel %vm407, %v983, 0.0
      %996 = vadd.xlane.f32.xlu0 %v995
      %v997 = vpop.xlane.xlu0 %996
      %v998 = vsel %vm407, %v985, 0.0
      %999 = vadd.xlane.f32.xlu0 %v998
      %v1000 = vpop.xlane.xlu0 %999
      %v1001 = vsel %vm407, %v987, 0.0
      %1002 = vadd.xlane.f32.xlu0 %v1001
      %v1003 = vpop.xlane.xlu0 %1002
      %v1004 = vsel %vm407, %v989, 0.0
      %1005 = vadd.xlane.f32.xlu0 %v1004
      %v1006 = vpop.xlane.xlu0 %1005
      %v1007 = vsel %vm407, %v991, 0.0
      %1008 = vadd.xlane.f32.xlu0 %v1007
      %v1009 = vpop.xlane.xlu0 %1008
      %v1010 = vrcp.pop %v994
      %v1011 = vrcp.pop %v997
      %v1012 = vrcp.pop %v1000
      %v1013 = vrcp.pop %v1003
      %v1014 = vrcp.pop %v1006
      %v1015 = vrcp.pop %v1009
      %v1016 = vmul.f32 %v981, %v1010
      %v1017 = vmul.f32 %v983, %v1011
      %v1018 = vmul.f32 %v985, %v1012
      %v1019 = vmul.f32 %v987, %v1013
      %v1020 = vmul.f32 %v989, %v1014
      %v1021 = vmul.f32 %v991, %v1015
      %1022 = vrot.lane.b32.xlu0 %v312, 48
      %v1023 = vpop.permute.xlu0 %1022
      %1024 = vrot.lane.b32.xlu0 %v315, 48
      %v1025 = vpop.permute.xlu0 %1024
      %1026 = vrot.lane.b32.xlu0 %v318, 48
      %v1027 = vpop.permute.xlu0 %1026
      %1028 = vrot.lane.b32.xlu0 %v321, 48
      %v1029 = vpop.permute.xlu0 %1028
      %1030 = vrot.lane.b32.xlu0 %v324, 48
      %v1031 = vpop.permute.xlu0 %1030
      %1032 = vrot.lane.b32.xlu0 %v327, 48
      %v1033 = vpop.permute.xlu0 %1032
      %v1041 = vsel %vm407, %v1016, 0
      %v1044 = vsel %vm407, %v1017, 0
      %v1047 = vsel %vm407, %v1018, 0
      %v1050 = vsel %vm407, %v1019, 0
      %v1053 = vsel %vm407, %v1020, 0
      %v1056 = vsel %vm407, %v1021, 0
      %1058 = vmatpush.msra.mxu0 0.0
      %1059 = vmatpush.msra.mxu0 0.0
      %1060 = vmatpush.msra.mxu0 0.0
      %1061 = vmatpush.msra.mxu0 0.0
      %1062 = vmatpush.msra.mxu0 0.0
      %1063 = vmatpush.msra.mxu0 0.0
      %1064 = vmatpush.msra.mxu0 0.0
      %1065 = vmatpush.msra.mxu0 0.0
      %1066 = vmatpush.msra.mxu0 0.0
      %1067 = vmatpush.msra.mxu0 0.0
      %1068 = vmatpush.msra.mxu0 %v1033
      %1069 = vmatpush.msra.mxu0 %v1031
      %1070 = vmatpush.msra.mxu0 %v1029
      %1071 = vmatpush.msra.mxu0 %v1027
      %1072 = vmatpush.msra.mxu0 %v1025
      %1073 = vmatpush.msra.mxu0 %v1023
      %1074 = vmatmul.f32.gmra.mxu0 %v1041
      %v1075 = vpop.f32.mrf.mxu0
      %v1076 = vadd.f32 0.0, %v1075
      %1077 = vmatmul.f32.gmra.mxu0 %v1044
      %v1078 = vpop.f32.mrf.mxu0
      %v1079 = vadd.f32 0.0, %v1078
      %1080 = vmatmul.f32.gmra.mxu0 %v1047
      %v1081 = vpop.f32.mrf.mxu0
      %v1082 = vadd.f32 0.0, %v1081
      %1083 = vmatmul.f32.gmra.mxu0 %v1050
      %v1084 = vpop.f32.mrf.mxu0
      %v1085 = vadd.f32 0.0, %v1084
      %1086 = vmatmul.f32.gmra.mxu0 %v1053
      %v1087 = vpop.f32.mrf.mxu0
      %v1088 = vadd.f32 0.0, %v1087
      %1089 = vmatmul.f32.gmra.mxu0 %v1056
      %v1090 = vpop.f32.mrf.mxu0
      %v1091 = vadd.f32 0.0, %v1090
      %1092 = vdwg.mxu0
      %v1093 = vld [vmem:[%s4 + $0x10] sm:$0xff]
      %v1095 = vsel %vm347, %v1076, 0
      %v1098 = vsel %vm347, %v1079, 0
      %v1101 = vsel %vm347, %v1082, 0
      %v1104 = vsel %vm347, %v1085, 0
      %v1107 = vsel %vm347, %v1088, 0
      %v1110 = vsel %vm347, %v1091, 0
      %1112 = vmatpush.msra.mxu0 0.0
      %1113 = vmatpush.msra.mxu0 0.0
      %1114 = vmatpush.msra.mxu0 0.0
      %1115 = vmatpush.msra.mxu0 0.0
      %1116 = vmatpush.msra.mxu0 0.0
      %1117 = vmatpush.msra.mxu0 0.0
      %1118 = vmatpush.msra.mxu0 0.0
      %1119 = vmatpush.msra.mxu0 0.0
      %1120 = vmatpush.msra.mxu0 0.0
      %1121 = vmatpush.msra.mxu0 0.0
      %1122 = vmatpush.msra.mxu0 0.0
      %1123 = vmatpush.msra.mxu0 0.0
      %1124 = vmatpush.msra.mxu0 0.0
      %1125 = vmatpush.msra.mxu0 0.0
      %1126 = vmatpush.msra.mxu0 0.0
      %1127 = vmatpush.msra.mxu0 %v1093
      %1128 = vmatmul.f32.gmra.mxu0 %v1095
      %v1129 = vpop.f32.mrf.mxu0
      %v1130 = vadd.f32 0.0, %v1129
      %1131 = vmatmul.f32.gmra.mxu0 %v1098
      %v1132 = vpop.f32.mrf.mxu0
      %v1133 = vadd.f32 0.0, %v1132
      %1134 = vmatmul.f32.gmra.mxu0 %v1101
      %v1135 = vpop.f32.mrf.mxu0
      %v1136 = vadd.f32 0.0, %v1135
      %1137 = vmatmul.f32.gmra.mxu0 %v1104
      %v1138 = vpop.f32.mrf.mxu0
      %v1139 = vadd.f32 0.0, %v1138
      %1140 = vmatmul.f32.gmra.mxu0 %v1107
      %v1141 = vpop.f32.mrf.mxu0
      %v1142 = vadd.f32 0.0, %v1141
      %1143 = vmatmul.f32.gmra.mxu0 %v1110
      %v1144 = vpop.f32.mrf.mxu0
      %v1145 = vadd.f32 0.0, %v1144
      %1146 = vdwg.mxu0
      %v1147 = vadd.f32 %v856, %v1130
      %v1148 = vadd.f32 %v859, %v1133
      %v1149 = vadd.f32 %v862, %v1136
      %v1150 = vadd.f32 %v865, %v1139
      %v1151 = vadd.f32 %v868, %v1142
      %v1152 = vadd.f32 %v871, %v1145
      %1153 = vrot.lane.b32.xlu0 %v312, 104
      %v1154 = vpop.permute.xlu0 %1153
      %1155 = vrot.lane.b32.xlu0 %v315, 104
      %v1156 = vpop.permute.xlu0 %1155
      %1157 = vrot.lane.b32.xlu0 %v318, 104
      %v1158 = vpop.permute.xlu0 %1157
      %1159 = vrot.lane.b32.xlu0 %v321, 104
      %v1160 = vpop.permute.xlu0 %1159
      %1161 = vrot.lane.b32.xlu0 %v324, 104
      %v1162 = vpop.permute.xlu0 %1161
      %1163 = vrot.lane.b32.xlu0 %v327, 104
      %v1164 = vpop.permute.xlu0 %1163
      %1165 = vrot.lane.b32.xlu0 %v312, 72
      %v1166 = vpop.permute.xlu0 %1165
      %1167 = vrot.lane.b32.xlu0 %v315, 72
      %v1168 = vpop.permute.xlu0 %1167
      %1169 = vrot.lane.b32.xlu0 %v318, 72
      %v1170 = vpop.permute.xlu0 %1169
      %1171 = vrot.lane.b32.xlu0 %v321, 72
      %v1172 = vpop.permute.xlu0 %1171
      %1173 = vrot.lane.b32.xlu0 %v324, 72
      %v1174 = vpop.permute.xlu0 %1173
      %1175 = vrot.lane.b32.xlu0 %v327, 72
      %v1176 = vpop.permute.xlu0 %1175
      %v1177 = vsel %vm347, %v1154, 0
      %v1179 = vsel %vm347, %v1156, 0
      %v1181 = vsel %vm347, %v1158, 0
      %v1183 = vsel %vm347, %v1160, 0
      %v1185 = vsel %vm347, %v1162, 0
      %v1187 = vsel %vm347, %v1164, 0
      %v1189 = vsel %vm347, %v1166, 0
      %v1191 = vsel %vm347, %v1168, 0
      %v1193 = vsel %vm347, %v1170, 0
      %v1195 = vsel %vm347, %v1172, 0
      %v1197 = vsel %vm347, %v1174, 0
      %v1199 = vsel %vm347, %v1176, 0
      %1201 = vmatpush.xpose.msra.mxu0 0.0
      %1202 = vmatpush.xpose.msra.mxu0 0.0
      %1203 = vmatpush.xpose.msra.mxu0 0.0
      %1204 = vmatpush.xpose.msra.mxu0 0.0
      %1205 = vmatpush.xpose.msra.mxu0 0.0
      %1206 = vmatpush.xpose.msra.mxu0 0.0
      %1207 = vmatpush.xpose.msra.mxu0 0.0
      %1208 = vmatpush.xpose.msra.mxu0 0.0
      %1209 = vmatpush.xpose.msra.mxu0 0.0
      %1210 = vmatpush.xpose.msra.mxu0 0.0
      %1211 = vmatpush.xpose.msra.mxu0 %v1199
      %1212 = vmatpush.xpose.msra.mxu0 %v1197
      %1213 = vmatpush.xpose.msra.mxu0 %v1195
      %1214 = vmatpush.xpose.msra.mxu0 %v1193
      %1215 = vmatpush.xpose.msra.mxu0 %v1191
      %1216 = vmatpush.xpose.msra.mxu0 %v1189
      %1217 = vmatmul.f32.gmra.mxu0 %v1177
      %v1218 = vpop.f32.mrf.mxu0
      %v1219 = vadd.f32 %v261, %v1218
      %1220 = vmatmul.f32.gmra.mxu0 %v1179
      %v1221 = vpop.f32.mrf.mxu0
      %v1222 = vadd.f32 %v262, %v1221
      %1223 = vmatmul.f32.gmra.mxu0 %v1181
      %v1224 = vpop.f32.mrf.mxu0
      %v1225 = vadd.f32 %v263, %v1224
      %1226 = vmatmul.f32.gmra.mxu0 %v1183
      %v1227 = vpop.f32.mrf.mxu0
      %v1228 = vadd.f32 %v264, %v1227
      %1229 = vmatmul.f32.gmra.mxu0 %v1185
      %v1230 = vpop.f32.mrf.mxu0
      %v1231 = vadd.f32 %v265, %v1230
      %1232 = vmatmul.f32.gmra.mxu0 %v1187
      %v1233 = vpop.f32.mrf.mxu0
      %v1234 = vadd.f32 %v266, %v1233
      %1235 = vdwg.mxu0
      %v1236 = vsel %vm407, %v1219, -inf
      %1237 = vmax.xlane.f32.xlu0 %v1236
      %v1238 = vpop.xlane.xlu0 %1237
      %v1239 = vsel %vm407, %v1222, -inf
      %1240 = vmax.xlane.f32.xlu0 %v1239
      %v1241 = vpop.xlane.xlu0 %1240
      %v1242 = vsel %vm407, %v1225, -inf
      %1243 = vmax.xlane.f32.xlu0 %v1242
      %v1244 = vpop.xlane.xlu0 %1243
      %v1245 = vsel %vm407, %v1228, -inf
      %1246 = vmax.xlane.f32.xlu0 %v1245
      %v1247 = vpop.xlane.xlu0 %1246
      %v1248 = vsel %vm407, %v1231, -inf
      %1249 = vmax.xlane.f32.xlu0 %v1248
      %v1250 = vpop.xlane.xlu0 %1249
      %v1251 = vsel %vm407, %v1234, -inf
      %1252 = vmax.xlane.f32.xlu0 %v1251
      %v1253 = vpop.xlane.xlu0 %1252
      %v1254 = vsub.f32 %v1219, %v1238
      %v1255 = vsub.f32 %v1222, %v1241
      %v1256 = vsub.f32 %v1225, %v1244
      %v1257 = vsub.f32 %v1228, %v1247
      %v1258 = vsub.f32 %v1231, %v1250
      %v1259 = vsub.f32 %v1234, %v1253
      %v1260 = vmul.f32 %v1254, 1.442695
      %v1261 = vpow.pop %v1260
      %v1262 = vmul.f32 %v1255, 1.442695
      %v1263 = vpow.pop %v1262
      %v1264 = vmul.f32 %v1256, 1.442695
      %v1265 = vpow.pop %v1264
      %v1266 = vmul.f32 %v1257, 1.442695
      %v1267 = vpow.pop %v1266
      %v1268 = vmul.f32 %v1258, 1.442695
      %v1269 = vpow.pop %v1268
      %v1270 = vmul.f32 %v1259, 1.442695
      %v1271 = vpow.pop %v1270
      %v1272 = vsel %vm407, %v1261, 0.0
      %1273 = vadd.xlane.f32.xlu0 %v1272
      %v1274 = vpop.xlane.xlu0 %1273
      %v1275 = vsel %vm407, %v1263, 0.0
      %1276 = vadd.xlane.f32.xlu0 %v1275
      %v1277 = vpop.xlane.xlu0 %1276
      %v1278 = vsel %vm407, %v1265, 0.0
      %1279 = vadd.xlane.f32.xlu0 %v1278
      %v1280 = vpop.xlane.xlu0 %1279
      %v1281 = vsel %vm407, %v1267, 0.0
      %1282 = vadd.xlane.f32.xlu0 %v1281
      %v1283 = vpop.xlane.xlu0 %1282
      %v1284 = vsel %vm407, %v1269, 0.0
      %1285 = vadd.xlane.f32.xlu0 %v1284
      %v1286 = vpop.xlane.xlu0 %1285
      %v1287 = vsel %vm407, %v1271, 0.0
      %1288 = vadd.xlane.f32.xlu0 %v1287
      %v1289 = vpop.xlane.xlu0 %1288
      %v1290 = vrcp.pop %v1274
      %v1291 = vrcp.pop %v1277
      %v1292 = vrcp.pop %v1280
      %v1293 = vrcp.pop %v1283
      %v1294 = vrcp.pop %v1286
      %v1295 = vrcp.pop %v1289
      %v1296 = vmul.f32 %v1261, %v1290
      %v1297 = vmul.f32 %v1263, %v1291
      %v1298 = vmul.f32 %v1265, %v1292
      %v1299 = vmul.f32 %v1267, %v1293
      %v1300 = vmul.f32 %v1269, %v1294
      %v1301 = vmul.f32 %v1271, %v1295
      %1302 = vrot.lane.b32.xlu0 %v312, 40
      %v1303 = vpop.permute.xlu0 %1302
      %1304 = vrot.lane.b32.xlu0 %v315, 40
      %v1305 = vpop.permute.xlu0 %1304
      %1306 = vrot.lane.b32.xlu0 %v318, 40
      %v1307 = vpop.permute.xlu0 %1306
      %1308 = vrot.lane.b32.xlu0 %v321, 40
      %v1309 = vpop.permute.xlu0 %1308
      %1310 = vrot.lane.b32.xlu0 %v324, 40
      %v1311 = vpop.permute.xlu0 %1310
      %1312 = vrot.lane.b32.xlu0 %v327, 40
      %v1313 = vpop.permute.xlu0 %1312
      %v1321 = vsel %vm407, %v1296, 0
      %v1324 = vsel %vm407, %v1297, 0
      %v1327 = vsel %vm407, %v1298, 0
      %v1330 = vsel %vm407, %v1299, 0
      %v1333 = vsel %vm407, %v1300, 0
      %v1336 = vsel %vm407, %v1301, 0
      %1338 = vmatpush.msra.mxu0 0.0
      %1339 = vmatpush.msra.mxu0 0.0
      %1340 = vmatpush.msra.mxu0 0.0
      %1341 = vmatpush.msra.mxu0 0.0
      %1342 = vmatpush.msra.mxu0 0.0
      %1343 = vmatpush.msra.mxu0 0.0
      %1344 = vmatpush.msra.mxu0 0.0
      %1345 = vmatpush.msra.mxu0 0.0
      %1346 = vmatpush.msra.mxu0 0.0
      %1347 = vmatpush.msra.mxu0 0.0
      %1348 = vmatpush.msra.mxu0 %v1313
      %1349 = vmatpush.msra.mxu0 %v1311
      %1350 = vmatpush.msra.mxu0 %v1309
      %1351 = vmatpush.msra.mxu0 %v1307
      %1352 = vmatpush.msra.mxu0 %v1305
      %1353 = vmatpush.msra.mxu0 %v1303
      %1354 = vmatmul.f32.gmra.mxu0 %v1321
      %v1355 = vpop.f32.mrf.mxu0
      %v1356 = vadd.f32 0.0, %v1355
      %1357 = vmatmul.f32.gmra.mxu0 %v1324
      %v1358 = vpop.f32.mrf.mxu0
      %v1359 = vadd.f32 0.0, %v1358
      %1360 = vmatmul.f32.gmra.mxu0 %v1327
      %v1361 = vpop.f32.mrf.mxu0
      %v1362 = vadd.f32 0.0, %v1361
      %1363 = vmatmul.f32.gmra.mxu0 %v1330
      %v1364 = vpop.f32.mrf.mxu0
      %v1365 = vadd.f32 0.0, %v1364
      %1366 = vmatmul.f32.gmra.mxu0 %v1333
      %v1367 = vpop.f32.mrf.mxu0
      %v1368 = vadd.f32 0.0, %v1367
      %1369 = vmatmul.f32.gmra.mxu0 %v1336
      %v1370 = vpop.f32.mrf.mxu0
      %v1371 = vadd.f32 0.0, %v1370
      %1372 = vdwg.mxu0
      %v1373 = vld [vmem:[%s4 + $0x18] sm:$0xff]
      %v1375 = vsel %vm347, %v1356, 0
      %v1378 = vsel %vm347, %v1359, 0
      %v1381 = vsel %vm347, %v1362, 0
      %v1384 = vsel %vm347, %v1365, 0
      %v1387 = vsel %vm347, %v1368, 0
      %v1390 = vsel %vm347, %v1371, 0
      %1392 = vmatpush.msra.mxu0 0.0
      %1393 = vmatpush.msra.mxu0 0.0
      %1394 = vmatpush.msra.mxu0 0.0
      %1395 = vmatpush.msra.mxu0 0.0
      %1396 = vmatpush.msra.mxu0 0.0
      %1397 = vmatpush.msra.mxu0 0.0
      %1398 = vmatpush.msra.mxu0 0.0
      %1399 = vmatpush.msra.mxu0 0.0
      %1400 = vmatpush.msra.mxu0 0.0
      %1401 = vmatpush.msra.mxu0 0.0
      %1402 = vmatpush.msra.mxu0 0.0
      %1403 = vmatpush.msra.mxu0 0.0
      %1404 = vmatpush.msra.mxu0 0.0
      %1405 = vmatpush.msra.mxu0 0.0
      %1406 = vmatpush.msra.mxu0 0.0
      %1407 = vmatpush.msra.mxu0 %v1373
      %1408 = vmatmul.f32.gmra.mxu0 %v1375
      %v1409 = vpop.f32.mrf.mxu0
      %v1410 = vadd.f32 0.0, %v1409
      %1411 = vmatmul.f32.gmra.mxu0 %v1378
      %v1412 = vpop.f32.mrf.mxu0
      %v1413 = vadd.f32 0.0, %v1412
      %1414 = vmatmul.f32.gmra.mxu0 %v1381
      %v1415 = vpop.f32.mrf.mxu0
      %v1416 = vadd.f32 0.0, %v1415
      %1417 = vmatmul.f32.gmra.mxu0 %v1384
      %v1418 = vpop.f32.mrf.mxu0
      %v1419 = vadd.f32 0.0, %v1418
      %1420 = vmatmul.f32.gmra.mxu0 %v1387
      %v1421 = vpop.f32.mrf.mxu0
      %v1422 = vadd.f32 0.0, %v1421
      %1423 = vmatmul.f32.gmra.mxu0 %v1390
      %v1424 = vpop.f32.mrf.mxu0
      %v1425 = vadd.f32 0.0, %v1424
      %1426 = vdwg.mxu0
      %v1427 = vadd.f32 %v1147, %v1410
      %v1428 = vadd.f32 %v1148, %v1413
      %v1429 = vadd.f32 %v1149, %v1416
      %v1430 = vadd.f32 %v1150, %v1419
      %v1431 = vadd.f32 %v1151, %v1422
      %v1432 = vadd.f32 %v1152, %v1425
      %v1433 = vld [vmem:[%s5] sm:$0x1]
      %v1434 = vld [vmem:[%s5 + $0x1] sm:$0x1]
      %v1435 = vld [vmem:[%s5 + $0x2] sm:$0x1]
      %v1436 = vperm.slane %v1433, 0
      %v1437 = vadd.f32 %v1427, %v1436
      %v1438 = vadd.f32 %v1428, %v1436
      %v1439 = vadd.f32 %v1429, %v1436
      %v1440 = vadd.f32 %v1430, %v1436
      %v1441 = vadd.f32 %v1431, %v1436
      %v1442 = vadd.f32 %v1432, %v1436
      %v1443 = vadd.f32 %v1437, %v255
      %v1444 = vadd.f32 %v1438, %v256
      %v1445 = vadd.f32 %v1439, %v257
      %v1446 = vadd.f32 %v1440, %v258
      %v1447 = vadd.f32 %v1441, %v259
      %v1448 = vadd.f32 %v1442, %v260
      %v1449 = vsel %vm275, %v1443, 0.0
      %1450 = vadd.xlane.f32.xlu0 %v1449
      %v1451 = vpop.xlane.xlu0 %1450
      %v1452 = vsel %vm275, %v1444, 0.0
      %1453 = vadd.xlane.f32.xlu0 %v1452
      %v1454 = vpop.xlane.xlu0 %1453
      %v1455 = vsel %vm275, %v1445, 0.0
      %1456 = vadd.xlane.f32.xlu0 %v1455
      %v1457 = vpop.xlane.xlu0 %1456
      %v1458 = vsel %vm275, %v1446, 0.0
      %1459 = vadd.xlane.f32.xlu0 %v1458
      %v1460 = vpop.xlane.xlu0 %1459
      %v1461 = vsel %vm275, %v1447, 0.0
      %1462 = vadd.xlane.f32.xlu0 %v1461
      %v1463 = vpop.xlane.xlu0 %1462
      %v1464 = vsel %vm275, %v1448, 0.0
      %1465 = vadd.xlane.f32.xlu0 %v1464
      %v1466 = vpop.xlane.xlu0 %1465
      %v1467 = vrcp.pop 32.0
      %v1468 = vmul.f32 32.0, %v1467
      %v1469 = vsub.f32 1.0, %v1468
      %v1470 = vmul.f32 %v1467, %v1469
      %v1471 = vadd.f32 %v1467, %v1470
      %vm1472 = vweird.f32 %v1467
      %v1473 = vsel %vm1472, %v1467, %v1471
      %v1474 = vmul.f32 %v1451, %v1473
      %v1475 = vmul.f32 %v1454, %v1473
      %v1476 = vmul.f32 %v1457, %v1473
      %v1477 = vmul.f32 %v1460, %v1473
      %v1478 = vmul.f32 %v1463, %v1473
      %v1479 = vmul.f32 %v1466, %v1473
      %v1480 = vsub.f32 %v1443, %v1474
      %v1481 = vsub.f32 %v1444, %v1475
      %v1482 = vsub.f32 %v1445, %v1476
      %v1483 = vsub.f32 %v1446, %v1477
      %v1484 = vsub.f32 %v1447, %v1478
      %v1485 = vsub.f32 %v1448, %v1479
      %v1486 = vmul.f32 %v1480, %v1480
      %v1487 = vmul.f32 %v1481, %v1481
      %v1488 = vmul.f32 %v1482, %v1482
      %v1489 = vmul.f32 %v1483, %v1483
      %v1490 = vmul.f32 %v1484, %v1484
      %v1491 = vmul.f32 %v1485, %v1485
      %v1492 = vsel %vm275, %v1486, 0.0
      %1493 = vadd.xlane.f32.xlu0 %v1492
      %v1494 = vpop.xlane.xlu0 %1493
      %v1495 = vsel %vm275, %v1487, 0.0
      %1496 = vadd.xlane.f32.xlu0 %v1495
      %v1497 = vpop.xlane.xlu0 %1496
      %v1498 = vsel %vm275, %v1488, 0.0
      %1499 = vadd.xlane.f32.xlu0 %v1498
      %v1500 = vpop.xlane.xlu0 %1499
      %v1501 = vsel %vm275, %v1489, 0.0
      %1502 = vadd.xlane.f32.xlu0 %v1501
      %v1503 = vpop.xlane.xlu0 %1502
      %v1504 = vsel %vm275, %v1490, 0.0
      %1505 = vadd.xlane.f32.xlu0 %v1504
      %v1506 = vpop.xlane.xlu0 %1505
      %v1507 = vsel %vm275, %v1491, 0.0
      %1508 = vadd.xlane.f32.xlu0 %v1507
      %v1509 = vpop.xlane.xlu0 %1508
      %v1510 = vmul.f32 %v1494, %v1473
      %v1511 = vmul.f32 %v1497, %v1473
      %v1512 = vmul.f32 %v1500, %v1473
      %v1513 = vmul.f32 %v1503, %v1473
      %v1514 = vmul.f32 %v1506, %v1473
      %v1515 = vmul.f32 %v1509, %v1473
      %v1516 = vadd.f32 %v1510, 1e-05
      %v1517 = vadd.f32 %v1511, 1e-05
      %v1518 = vadd.f32 %v1512, 1e-05
      %v1519 = vadd.f32 %v1513, 1e-05
      %v1520 = vadd.f32 %v1514, 1e-05
      %v1521 = vadd.f32 %v1515, 1e-05
      %v1522 = vrsqrt.pop %v1516
      %v1523 = vmul.f32 %v1522, %v1516
      %v1524 = vmul.f32 %v1523, %v1522
      %v1525 = vmul.f32 0.5, %v1524
      %v1526 = vsub.f32 1.5, %v1525
      %v1527 = vmul.f32 %v1522, %v1526
      %vm1528 = vweird.f32 %v1516
      %vm1529 = vweird.f32 %v1522
      %vm1530 = vmor %vm1528, %vm1529
      %v1531 = vsel %vm1530, %v1522, %v1527
      %v1532 = vrsqrt.pop %v1517
      %v1533 = vmul.f32 %v1532, %v1517
      %v1534 = vmul.f32 %v1533, %v1532
      %v1535 = vmul.f32 0.5, %v1534
      %v1536 = vsub.f32 1.5, %v1535
      %v1537 = vmul.f32 %v1532, %v1536
      %vm1538 = vweird.f32 %v1517
      %vm1539 = vweird.f32 %v1532
      %vm1540 = vmor %vm1538, %vm1539
      %v1541 = vsel %vm1540, %v1532, %v1537
      %v1542 = vrsqrt.pop %v1518
      %v1543 = vmul.f32 %v1542, %v1518
      %v1544 = vmul.f32 %v1543, %v1542
      %v1545 = vmul.f32 0.5, %v1544
      %v1546 = vsub.f32 1.5, %v1545
      %v1547 = vmul.f32 %v1542, %v1546
      %vm1548 = vweird.f32 %v1518
      %vm1549 = vweird.f32 %v1542
      %vm1550 = vmor %vm1548, %vm1549
      %v1551 = vsel %vm1550, %v1542, %v1547
      %v1552 = vrsqrt.pop %v1519
      %v1553 = vmul.f32 %v1552, %v1519
      %v1554 = vmul.f32 %v1553, %v1552
      %v1555 = vmul.f32 0.5, %v1554
      %v1556 = vsub.f32 1.5, %v1555
      %v1557 = vmul.f32 %v1552, %v1556
      %vm1558 = vweird.f32 %v1519
      %vm1559 = vweird.f32 %v1552
      %vm1560 = vmor %vm1558, %vm1559
      %v1561 = vsel %vm1560, %v1552, %v1557
      %v1562 = vrsqrt.pop %v1520
      %v1563 = vmul.f32 %v1562, %v1520
      %v1564 = vmul.f32 %v1563, %v1562
      %v1565 = vmul.f32 0.5, %v1564
      %v1566 = vsub.f32 1.5, %v1565
      %v1567 = vmul.f32 %v1562, %v1566
      %vm1568 = vweird.f32 %v1520
      %vm1569 = vweird.f32 %v1562
      %vm1570 = vmor %vm1568, %vm1569
      %v1571 = vsel %vm1570, %v1562, %v1567
      %v1572 = vrsqrt.pop %v1521
      %v1573 = vmul.f32 %v1572, %v1521
      %v1574 = vmul.f32 %v1573, %v1572
      %v1575 = vmul.f32 0.5, %v1574
      %v1576 = vsub.f32 1.5, %v1575
      %v1577 = vmul.f32 %v1572, %v1576
      %vm1578 = vweird.f32 %v1521
      %vm1579 = vweird.f32 %v1572
      %vm1580 = vmor %vm1578, %vm1579
      %v1581 = vsel %vm1580, %v1572, %v1577
      %v1582 = vmul.f32 %v1480, %v1531
      %v1583 = vmul.f32 %v1481, %v1541
      %v1584 = vmul.f32 %v1482, %v1551
      %v1585 = vmul.f32 %v1483, %v1561
      %v1586 = vmul.f32 %v1484, %v1571
      %v1587 = vmul.f32 %v1485, %v1581
      %v1588 = vperm.slane %v1434, 0
      %v1589 = vmul.f32 %v1582, %v1588
      %v1590 = vmul.f32 %v1583, %v1588
      %v1591 = vmul.f32 %v1584, %v1588
      %v1592 = vmul.f32 %v1585, %v1588
      %v1593 = vmul.f32 %v1586, %v1588
      %v1594 = vmul.f32 %v1587, %v1588
      %v1595 = vperm.slane %v1435, 0
      %v1596 = vadd.f32 %v1589, %v1595
      %v1597 = vadd.f32 %v1590, %v1595
      %v1598 = vadd.f32 %v1591, %v1595
      %v1599 = vadd.f32 %v1592, %v1595
      %v1600 = vadd.f32 %v1593, %v1595
      %v1601 = vadd.f32 %v1594, %v1595
      %1602 = vst.msk [vmem:[%s253] sm:$0xff] %vm275, %v1596
      %1603 = vst.msk [vmem:[%s253 + $0x8] sm:$0xff] %vm275, %v1597
      %1604 = vst.msk [vmem:[%s253 + $0x10] sm:$0xff] %vm275, %v1598
      %1605 = vst.msk [vmem:[%s253 + $0x18] sm:$0xff] %vm275, %v1599
      %1606 = vst.msk [vmem:[%s253 + $0x20] sm:$0xff] %vm275, %v1600
      %1607 = vst.msk [vmem:[%s253 + $0x28] sm:$0xff] %vm275, %v1601
      %s1608 = smul.u32 6, %s17
      %p1609 = scmp.lt.s32.totalorder %s1608, 11
      %s1610 = scalar_select %p1609, %s1608, 11
      %s1611 = smul.addr %s1610, 8
      %s1612 = scalar_lea.vmem %s6, %s1611
      // Predicated region
      $region45: #{tpu_custom_call.1} parent=43 // pred_check
        %p1613 = pneg %p166
      $region46: #{tpu_custom_call.1} parent=43 // pred_check_branch
        %1615 = sbr.rel (%p1613) target = $region48
      $region47: #{tpu_custom_call.1} parent=43 // pred_region
        %s1616 = smul.u32 6, %s17
      $region48: #{tpu_custom_call.1} parent=43 // pred_fallthru
        _
    $region44: #{tpu_custom_call.1} parent=5 // pred_fallthru
      _
    %p1617 = scmp.le.s32.totalorder 2, %s12
    // Predicated region
    $region49: #{tpu_custom_call.1} parent=5 // pred_check
      %p1618 = pneg %p1617
    $region50: #{tpu_custom_call.1} parent=5 // pred_check_branch
      %1620 = sbr.rel (%p1618) target = $region52
    $region51: #{tpu_custom_call.1} parent=5 // pred_region
      %s1621 = ssub.s32 %s12, 2
      // Predicated region
      $region53: #{tpu_custom_call.1} parent=51 // pred_check
        %p1622 = pneg %p172
      $region54: #{tpu_custom_call.1} parent=51 // pred_check_branch
        %1624 = sbr.rel (%p1622) target = $region56
      $region55: #{tpu_custom_call.1} parent=51 // pred_region
        %s1625 = smul.u32 6, %s18
        %p1626 = scmp.lt.s32.totalorder %s1625, 11
        %s1627 = scalar_select %p1626, %s1625, 11
        %s1628 = smul.addr %s1627, 8
        %s1629 = scalar_lea.vmem %s6, %s1628
      $region56: #{tpu_custom_call.1} parent=51 // pred_fallthru
        _
    $region52: #{tpu_custom_call.1} parent=5 // pred_fallthru
      _
  $region6: #{tpu_custom_call.1} parent=0 // loop_footer
    %s16 = sadd.s32 1, %s12
  $region7: #{tpu_custom_call.1} parent=0 // loop_footer_branch
    %11 = sbr.rel target = $region3
  $region8: #{tpu_custom_call.1} parent=0 // loop_exit
    _

</llo_original>
